<compile_context>
chip_gen: v5e
topology: v5e:2x2
jax: 0.10.0
libtpu: 0.0.40
codegen_flags: <defaults>
</compile_context>

<pallas_src>
import jax
import jax.numpy as jnp
from jax.experimental import pallas as pl
from jax.experimental.pallas import tpu as pltpu

INPUT_SIZE = 28 * 28   # 784 (full-dim block on the lane axis -> no K padding needed)
WIDTH = 128            # args.width surrogate (hidden width)
NUM_CLASSES = 10
N_PAD = 128            # lane-dense padded logits dim


def mlp_kernel(x_ref,
               w1_ref, b1_ref,
               w2_ref, b2_ref,
               w3_ref, b3_ref,
               w4_ref, b4_ref,
               w5_ref, b5_ref,
               wo_ref, bo_ref,
               out_ref):
    """One (TILE_B, 784) batch tile through the 6-layer MLP.

    Weights are bf16 (in, out); biases are f32 (1, out); accumulation is f32.
    """
    def dense(h_bf16, w_ref, b_ref, relu):
        y = jnp.dot(h_bf16, w_ref[...], preferred_element_type=jnp.float32) + b_ref[...]
        return jnp.maximum(y, 0.0) if relu else y

    h = x_ref[...]                                                   # bf16 (TILE_B, 784)
    h = dense(h, w1_ref, b1_ref, relu=True).astype(jnp.bfloat16)     # ff1 + ReLU
    h = dense(h, w2_ref, b2_ref, relu=True).astype(jnp.bfloat16)     # ff2 + ReLU
    h = dense(h, w3_ref, b3_ref, relu=True).astype(jnp.bfloat16)     # ff3 + ReLU
    h = dense(h, w4_ref, b4_ref, relu=True).astype(jnp.bfloat16)     # ff4 + ReLU
    h = dense(h, w5_ref, b5_ref, relu=True).astype(jnp.bfloat16)     # ff5 + ReLU
    out_ref[...] = dense(h, wo_ref, bo_ref, relu=False)              # ff_out (padded logits, f32)


def _choose_batch_tiling(B):
    """Pick (B_pad, TILE_B) per the perf review:
      * tiles >= 256 rows (fills the 256-row MXU on v6e/v7x) unless the batch is tiny,
      * keep >= 2 tiles when the batch allows it (v7x: 2 TensorCores split the
        "parallel" grid axis),
      * cap at 512 rows (ample MXU amortization; VMEM footprint stays ~1-2 MiB).
    """
    b128 = pl.cdiv(B, 128) * 128
    if b128 <= 256:
        return b128, b128                                   # single grid step
    tile = min(512, max(256, (b128 // 2) // 128 * 128))
    b_pad = pl.cdiv(b128, tile) * tile
    return b_pad, tile


def net_forward(x, params):
    """x: (B, INPUT_SIZE) f32.  params: 6 x (W_t bf16 (in, out_pad), b f32 (1, out_pad)).

    Returns (B, NUM_CLASSES) f32 logits.
    """
    B = x.shape[0]
    B_pad, tile_b = _choose_batch_tiling(B)
    num_tiles = B_pad // tile_b

    # Fused pad + cast: build the padded activation buffer directly in bf16
    # (single pass; no intermediate f32 (B_pad, 784) materialization).
    x_p = jnp.zeros((B_pad, INPUT_SIZE), jnp.bfloat16).at[:B, :].set(
        x.astype(jnp.bfloat16))

    flat_args = [x_p]
    for w_t, b_row in params:
        flat_args += [w_t, b_row]

    # x / out stream per batch tile; weights & biases are full, single-buffered
    # blocks with a constant index_map -> loaded once, VMEM-resident for the grid.
    x_spec = pl.BlockSpec((tile_b, INPUT_SIZE), lambda i: (i, 0))
    out_spec = pl.BlockSpec((tile_b, N_PAD), lambda i: (i, 0))

    def resident_spec(shape):
        return pl.BlockSpec(shape, lambda i: (0, 0), pipeline_mode=pl.Buffered(1))

    in_specs = [x_spec]
    for w_t, b_row in params:
        in_specs += [resident_spec(w_t.shape), resident_spec(b_row.shape)]

    flops = 2 * B_pad * (INPUT_SIZE * WIDTH + 4 * WIDTH * WIDTH + WIDTH * N_PAD)
    bytes_accessed = (x_p.size * 2
                      + sum(w.size * 2 + b.size * 4 for w, b in params)
                      + B_pad * N_PAD * 4)

    # NOTE: footprint at TILE_B=512 is well under the default scoped-VMEM limits on
    # all of v5e/v6e/v7x, so vmem_limit_bytes is left at its default.
    out_padded = pl.pallas_call(
        mlp_kernel,
        out_shape=jax.ShapeDtypeStruct((B_pad, N_PAD), jnp.float32),
        grid=(num_tiles,),
        in_specs=in_specs,
        out_specs=out_spec,
        compiler_params=pltpu.CompilerParams(
            dimension_semantics=("parallel",)),          # v7x: 2 TCs split batch tiles
        cost_estimate=pl.CostEstimate(
            flops=flops, transcendentals=0, bytes_accessed=bytes_accessed),
    )(*flat_args)

    return out_padded[:B, :NUM_CLASSES]


def init_params(key, input_size, width, num_classes):
    """PyTorch-Linear-like uniform init, lane-dense zero-padding of the output layer,
    bf16 weight cast.  Returns 6 x (W_t bf16 (in, out_pad), b f32 (1, out_pad))."""
    dims = [(input_size, width)] + [(width, width)] * 4 + [(width, num_classes)]
    pad_out = [width] * 5 + [N_PAD]
    params = []
    for (fan_in, fan_out), pout in zip(dims, pad_out):
        key, kw, kb = jax.random.split(key, 3)
        bound = 1.0 / jnp.sqrt(jnp.float32(fan_in))
        w = jax.random.uniform(kw, (fan_in, fan_out), jnp.float32, -bound, bound)
        b = jax.random.uniform(kb, (1, fan_out), jnp.float32, -bound, bound)
        w_p = jnp.zeros((fan_in, pout), jnp.float32).at[:, :fan_out].set(w)
        b_p = jnp.zeros((1, pout), jnp.float32).at[:, :fan_out].set(b)
        params.append((w_p.astype(jnp.bfloat16), b_p))
    return params


def reference_forward(x, params):
    """Pure-JAX reference mirroring the kernel's bf16 rounding with f32 accumulation."""
    h = x.astype(jnp.bfloat16).astype(jnp.float32)
    for i, (w_bf16, b) in enumerate(params):
        y = jnp.dot(h, w_bf16.astype(jnp.float32),
                    precision=jax.lax.Precision.HIGHEST) + b
        if i < len(params) - 1:
            h = jnp.maximum(y, 0.0).astype(jnp.bfloat16).astype(jnp.float32)
        else:
            h = y
    return h[:, :NUM_CLASSES]


if __name__ == "__main__":
    # MNIST-style flattened input.  batch=500 pads to 512 -> two 256-row tiles:
    # exercises the >=256 tile floor, the parallel grid axis (v7x), and the
    # batch-padding + slice-back path.
    batch = 500

    key = jax.random.PRNGKey(0)
    key, kx = jax.random.split(key)
    x = jax.random.normal(kx, (batch, INPUT_SIZE), jnp.float32)

    params = init_params(key, INPUT_SIZE, WIDTH, NUM_CLASSES)

    fwd = jax.jit(net_forward)           # pad/cast fuses into the same jit as the kernel
    out = jax.block_until_ready(fwd(x, params))

    ref = reference_forward(x, params)
    assert out.shape == (batch, NUM_CLASSES)
    assert jnp.allclose(out, ref, atol=2e-3, rtol=2e-3), "mismatch vs JAX reference"

    print("KERNEL_OK")
</pallas_src>

<mosaic_0001>
module attributes {stable_mosaic.version = 11 : i64} {
  func.func @mlp_kernel(%arg0: i32, %arg1: memref<256x784xbf16, #tpu.memory_space<vmem>>, %arg2: memref<784x128xbf16, #tpu.memory_space<vmem>>, %arg3: memref<1x128xf32, #tpu.memory_space<vmem>>, %arg4: memref<128x128xbf16, #tpu.memory_space<vmem>>, %arg5: memref<1x128xf32, #tpu.memory_space<vmem>>, %arg6: memref<128x128xbf16, #tpu.memory_space<vmem>>, %arg7: memref<1x128xf32, #tpu.memory_space<vmem>>, %arg8: memref<128x128xbf16, #tpu.memory_space<vmem>>, %arg9: memref<1x128xf32, #tpu.memory_space<vmem>>, %arg10: memref<128x128xbf16, #tpu.memory_space<vmem>>, %arg11: memref<1x128xf32, #tpu.memory_space<vmem>>, %arg12: memref<128x128xbf16, #tpu.memory_space<vmem>>, %arg13: memref<1x128xf32, #tpu.memory_space<vmem>>, %arg14: memref<256x128xf32, #tpu.memory_space<vmem>>) attributes {dimension_semantics = [#tpu.dimension_semantics<parallel>], iteration_bounds = array<i64: 2>, scalar_prefetch = 0 : i64, scratch_operands = 0 : i64, tpu.core_type = #tpu.core_type<tc>, window_params = [{transform_indices = @transform_0, window_bounds = array<i64: 256, 784>}, {pipeline_mode = #tpu.pipeline_mode<synchronous>, transform_indices = @transform_1, window_bounds = array<i64: 784, 128>}, {pipeline_mode = #tpu.pipeline_mode<synchronous>, transform_indices = @transform_2, window_bounds = array<i64: 1, 128>}, {pipeline_mode = #tpu.pipeline_mode<synchronous>, transform_indices = @transform_3, window_bounds = array<i64: 128, 128>}, {pipeline_mode = #tpu.pipeline_mode<synchronous>, transform_indices = @transform_4, window_bounds = array<i64: 1, 128>}, {pipeline_mode = #tpu.pipeline_mode<synchronous>, transform_indices = @transform_5, window_bounds = array<i64: 128, 128>}, {pipeline_mode = #tpu.pipeline_mode<synchronous>, transform_indices = @transform_6, window_bounds = array<i64: 1, 128>}, {pipeline_mode = #tpu.pipeline_mode<synchronous>, transform_indices = @transform_7, window_bounds = array<i64: 128, 128>}, {pipeline_mode = #tpu.pipeline_mode<synchronous>, transform_indices = @transform_8, window_bounds = array<i64: 1, 128>}, {pipeline_mode = #tpu.pipeline_mode<synchronous>, transform_indices = @transform_9, window_bounds = array<i64: 128, 128>}, {pipeline_mode = #tpu.pipeline_mode<synchronous>, transform_indices = @transform_10, window_bounds = array<i64: 1, 128>}, {pipeline_mode = #tpu.pipeline_mode<synchronous>, transform_indices = @transform_11, window_bounds = array<i64: 128, 128>}, {pipeline_mode = #tpu.pipeline_mode<synchronous>, transform_indices = @transform_12, window_bounds = array<i64: 1, 128>}, {transform_indices = @transform_13, window_bounds = array<i64: 256, 128>}]} {
    %c0 = arith.constant 0 : index
    %c0_0 = arith.constant 0 : index
    %0 = vector.load %arg1[%c0, %c0_0] : memref<256x784xbf16, #tpu.memory_space<vmem>>, vector<256x784xbf16>
    %c0_1 = arith.constant 0 : index
    %c0_2 = arith.constant 0 : index
    %1 = vector.load %arg2[%c0_1, %c0_2] : memref<784x128xbf16, #tpu.memory_space<vmem>>, vector<784x128xbf16>
    %cst = arith.constant dense<0.000000e+00> : vector<256x128xf32>
    %2 = tpu.matmul %0, %1, %cst {dimension_numbers = #tpu.dot_dimension_numbers<[1], [0], [0], [1], [0, 0, 1, 1], [], []>} : vector<256x784xbf16>, vector<784x128xbf16>, vector<256x128xf32> -> vector<256x128xf32>
    %c0_3 = arith.constant 0 : index
    %c0_4 = arith.constant 0 : index
    %3 = vector.load %arg3[%c0_3, %c0_4] : memref<1x128xf32, #tpu.memory_space<vmem>>, vector<1x128xf32>
    %4 = vector.broadcast %3 : vector<1x128xf32> to vector<256x128xf32>
    %5 = arith.addf %2, %4 : vector<256x128xf32>
    %cst_5 = arith.constant 0.000000e+00 : f32
    %6 = vector.broadcast %cst_5 : f32 to vector<256x128xf32>
    %7 = arith.maximumf %5, %6 : vector<256x128xf32>
    %8 = arith.truncf %7 : vector<256x128xf32> to vector<256x128xbf16>
    %c0_6 = arith.constant 0 : index
    %c0_7 = arith.constant 0 : index
    %9 = vector.load %arg4[%c0_6, %c0_7] : memref<128x128xbf16, #tpu.memory_space<vmem>>, vector<128x128xbf16>
    %cst_8 = arith.constant dense<0.000000e+00> : vector<256x128xf32>
    %10 = tpu.matmul %8, %9, %cst_8 {dimension_numbers = #tpu.dot_dimension_numbers<[1], [0], [0], [1], [0, 0, 1, 1], [], []>} : vector<256x128xbf16>, vector<128x128xbf16>, vector<256x128xf32> -> vector<256x128xf32>
    %c0_9 = arith.constant 0 : index
    %c0_10 = arith.constant 0 : index
    %11 = vector.load %arg5[%c0_9, %c0_10] : memref<1x128xf32, #tpu.memory_space<vmem>>, vector<1x128xf32>
    %12 = vector.broadcast %11 : vector<1x128xf32> to vector<256x128xf32>
    %13 = arith.addf %10, %12 : vector<256x128xf32>
    %cst_11 = arith.constant 0.000000e+00 : f32
    %14 = vector.broadcast %cst_11 : f32 to vector<256x128xf32>
    %15 = arith.maximumf %13, %14 : vector<256x128xf32>
    %16 = arith.truncf %15 : vector<256x128xf32> to vector<256x128xbf16>
    %c0_12 = arith.constant 0 : index
    %c0_13 = arith.constant 0 : index
    %17 = vector.load %arg6[%c0_12, %c0_13] : memref<128x128xbf16, #tpu.memory_space<vmem>>, vector<128x128xbf16>
    %cst_14 = arith.constant dense<0.000000e+00> : vector<256x128xf32>
    %18 = tpu.matmul %16, %17, %cst_14 {dimension_numbers = #tpu.dot_dimension_numbers<[1], [0], [0], [1], [0, 0, 1, 1], [], []>} : vector<256x128xbf16>, vector<128x128xbf16>, vector<256x128xf32> -> vector<256x128xf32>
    %c0_15 = arith.constant 0 : index
    %c0_16 = arith.constant 0 : index
    %19 = vector.load %arg7[%c0_15, %c0_16] : memref<1x128xf32, #tpu.memory_space<vmem>>, vector<1x128xf32>
    %20 = vector.broadcast %19 : vector<1x128xf32> to vector<256x128xf32>
    %21 = arith.addf %18, %20 : vector<256x128xf32>
    %cst_17 = arith.constant 0.000000e+00 : f32
    %22 = vector.broadcast %cst_17 : f32 to vector<256x128xf32>
    %23 = arith.maximumf %21, %22 : vector<256x128xf32>
    %24 = arith.truncf %23 : vector<256x128xf32> to vector<256x128xbf16>
    %c0_18 = arith.constant 0 : index
    %c0_19 = arith.constant 0 : index
    %25 = vector.load %arg8[%c0_18, %c0_19] : memref<128x128xbf16, #tpu.memory_space<vmem>>, vector<128x128xbf16>
    %cst_20 = arith.constant dense<0.000000e+00> : vector<256x128xf32>
    %26 = tpu.matmul %24, %25, %cst_20 {dimension_numbers = #tpu.dot_dimension_numbers<[1], [0], [0], [1], [0, 0, 1, 1], [], []>} : vector<256x128xbf16>, vector<128x128xbf16>, vector<256x128xf32> -> vector<256x128xf32>
    %c0_21 = arith.constant 0 : index
    %c0_22 = arith.constant 0 : index
    %27 = vector.load %arg9[%c0_21, %c0_22] : memref<1x128xf32, #tpu.memory_space<vmem>>, vector<1x128xf32>
    %28 = vector.broadcast %27 : vector<1x128xf32> to vector<256x128xf32>
    %29 = arith.addf %26, %28 : vector<256x128xf32>
    %cst_23 = arith.constant 0.000000e+00 : f32
    %30 = vector.broadcast %cst_23 : f32 to vector<256x128xf32>
    %31 = arith.maximumf %29, %30 : vector<256x128xf32>
    %32 = arith.truncf %31 : vector<256x128xf32> to vector<256x128xbf16>
    %c0_24 = arith.constant 0 : index
    %c0_25 = arith.constant 0 : index
    %33 = vector.load %arg10[%c0_24, %c0_25] : memref<128x128xbf16, #tpu.memory_space<vmem>>, vector<128x128xbf16>
    %cst_26 = arith.constant dense<0.000000e+00> : vector<256x128xf32>
    %34 = tpu.matmul %32, %33, %cst_26 {dimension_numbers = #tpu.dot_dimension_numbers<[1], [0], [0], [1], [0, 0, 1, 1], [], []>} : vector<256x128xbf16>, vector<128x128xbf16>, vector<256x128xf32> -> vector<256x128xf32>
    %c0_27 = arith.constant 0 : index
    %c0_28 = arith.constant 0 : index
    %35 = vector.load %arg11[%c0_27, %c0_28] : memref<1x128xf32, #tpu.memory_space<vmem>>, vector<1x128xf32>
    %36 = vector.broadcast %35 : vector<1x128xf32> to vector<256x128xf32>
    %37 = arith.addf %34, %36 : vector<256x128xf32>
    %cst_29 = arith.constant 0.000000e+00 : f32
    %38 = vector.broadcast %cst_29 : f32 to vector<256x128xf32>
    %39 = arith.maximumf %37, %38 : vector<256x128xf32>
    %40 = arith.truncf %39 : vector<256x128xf32> to vector<256x128xbf16>
    %c0_30 = arith.constant 0 : index
    %c0_31 = arith.constant 0 : index
    %41 = vector.load %arg12[%c0_30, %c0_31] : memref<128x128xbf16, #tpu.memory_space<vmem>>, vector<128x128xbf16>
    %cst_32 = arith.constant dense<0.000000e+00> : vector<256x128xf32>
    %42 = tpu.matmul %40, %41, %cst_32 {dimension_numbers = #tpu.dot_dimension_numbers<[1], [0], [0], [1], [0, 0, 1, 1], [], []>} : vector<256x128xbf16>, vector<128x128xbf16>, vector<256x128xf32> -> vector<256x128xf32>
    %c0_33 = arith.constant 0 : index
    %c0_34 = arith.constant 0 : index
    %43 = vector.load %arg13[%c0_33, %c0_34] : memref<1x128xf32, #tpu.memory_space<vmem>>, vector<1x128xf32>
    %44 = vector.broadcast %43 : vector<1x128xf32> to vector<256x128xf32>
    %45 = arith.addf %42, %44 : vector<256x128xf32>
    %c0_35 = arith.constant 0 : index
    %c0_36 = arith.constant 0 : index
    %46 = vector.load %arg14[%c0_35, %c0_36] : memref<256x128xf32, #tpu.memory_space<vmem>>, vector<256x128xf32>
    tpu.vector_store %arg14[%c0_35, %c0_36], %45 {strides = array<i32>} : memref<256x128xf32, #tpu.memory_space<vmem>>, vector<256x128xf32>,
    return
  }
  func.func @transform_0(%arg0: i32) -> (i32, i32) {
    %c0_i32 = arith.constant 0 : i32
    %c0_i32_0 = arith.constant 0 : i32
    return %arg0, %c0_i32 : i32, i32
  }
  func.func @transform_1(%arg0: i32) -> (i32, i32) {
    %c0_i32 = arith.constant 0 : i32
    %c0_i32_0 = arith.constant 0 : i32
    %c0_i32_1 = arith.constant 0 : i32
    return %c0_i32, %c0_i32_0 : i32, i32
  }
  func.func @transform_2(%arg0: i32) -> (i32, i32) {
    %c0_i32 = arith.constant 0 : i32
    %c0_i32_0 = arith.constant 0 : i32
    %c0_i32_1 = arith.constant 0 : i32
    return %c0_i32, %c0_i32_0 : i32, i32
  }
  func.func @transform_3(%arg0: i32) -> (i32, i32) {
    %c0_i32 = arith.constant 0 : i32
    %c0_i32_0 = arith.constant 0 : i32
    %c0_i32_1 = arith.constant 0 : i32
    return %c0_i32, %c0_i32_0 : i32, i32
  }
  func.func @transform_4(%arg0: i32) -> (i32, i32) {
    %c0_i32 = arith.constant 0 : i32
    %c0_i32_0 = arith.constant 0 : i32
    %c0_i32_1 = arith.constant 0 : i32
    return %c0_i32, %c0_i32_0 : i32, i32
  }
  func.func @transform_5(%arg0: i32) -> (i32, i32) {
    %c0_i32 = arith.constant 0 : i32
    %c0_i32_0 = arith.constant 0 : i32
    %c0_i32_1 = arith.constant 0 : i32
    return %c0_i32, %c0_i32_0 : i32, i32
  }
  func.func @transform_6(%arg0: i32) -> (i32, i32) {
    %c0_i32 = arith.constant 0 : i32
    %c0_i32_0 = arith.constant 0 : i32
    %c0_i32_1 = arith.constant 0 : i32
    return %c0_i32, %c0_i32_0 : i32, i32
  }
  func.func @transform_7(%arg0: i32) -> (i32, i32) {
    %c0_i32 = arith.constant 0 : i32
    %c0_i32_0 = arith.constant 0 : i32
    %c0_i32_1 = arith.constant 0 : i32
    return %c0_i32, %c0_i32_0 : i32, i32
  }
  func.func @transform_8(%arg0: i32) -> (i32, i32) {
    %c0_i32 = arith.constant 0 : i32
    %c0_i32_0 = arith.constant 0 : i32
    %c0_i32_1 = arith.constant 0 : i32
    return %c0_i32, %c0_i32_0 : i32, i32
  }
  func.func @transform_9(%arg0: i32) -> (i32, i32) {
    %c0_i32 = arith.constant 0 : i32
    %c0_i32_0 = arith.constant 0 : i32
    %c0_i32_1 = arith.constant 0 : i32
    return %c0_i32, %c0_i32_0 : i32, i32
  }
  func.func @transform_10(%arg0: i32) -> (i32, i32) {
    %c0_i32 = arith.constant 0 : i32
    %c0_i32_0 = arith.constant 0 : i32
    %c0_i32_1 = arith.constant 0 : i32
    return %c0_i32, %c0_i32_0 : i32, i32
  }
  func.func @transform_11(%arg0: i32) -> (i32, i32) {
    %c0_i32 = arith.constant 0 : i32
    %c0_i32_0 = arith.constant 0 : i32
    %c0_i32_1 = arith.constant 0 : i32
    return %c0_i32, %c0_i32_0 : i32, i32
  }
  func.func @transform_12(%arg0: i32) -> (i32, i32) {
    %c0_i32 = arith.constant 0 : i32
    %c0_i32_0 = arith.constant 0 : i32
    %c0_i32_1 = arith.constant 0 : i32
    return %c0_i32, %c0_i32_0 : i32, i32
  }
  func.func @transform_13(%arg0: i32) -> (i32, i32) {
    %c0_i32 = arith.constant 0 : i32
    %c0_i32_0 = arith.constant 0 : i32
    return %arg0, %c0_i32 : i32, i32
  }
}

</mosaic_0001>

<llo_original>
// kernel: net_forward.1
$region0: #{net_forward.1}
  #allocation0 [shape = 'u32[]', space=smem, size = 0x4, offset = 0x4, fixed_abs, tag = 'smem constant byte address 0x4 - core index']
  #allocation1 [shape = 'u32[72,128]{1,0:T(1,128)}', space=vmem, size = 0x9000, scoped, tag = 'internal scratch']
  %s0 = inlined_call_operand.vmem [shape: bf16[512,784], index: 0, kind: input, shape index: {}]
  %s1 = inlined_call_operand.vmem [shape: bf16[784,128], index: 1, kind: input, shape index: {}]
  %s2 = inlined_call_operand.vmem [shape: f32[1,128], index: 2, kind: input, shape index: {}]
  %s3 = inlined_call_operand.vmem [shape: bf16[128,128], index: 3, kind: input, shape index: {}]
  %s4 = inlined_call_operand.vmem [shape: f32[1,128], index: 4, kind: input, shape index: {}]
  %s5 = inlined_call_operand.vmem [shape: bf16[128,128], index: 5, kind: input, shape index: {}]
  %s6 = inlined_call_operand.vmem [shape: f32[1,128], index: 6, kind: input, shape index: {}]
  %s7 = inlined_call_operand.vmem [shape: bf16[128,128], index: 7, kind: input, shape index: {}]
  %s8 = inlined_call_operand.vmem [shape: f32[1,128], index: 8, kind: input, shape index: {}]
  %s9 = inlined_call_operand.vmem [shape: bf16[128,128], index: 9, kind: input, shape index: {}]
  %s10 = inlined_call_operand.vmem [shape: f32[1,128], index: 10, kind: input, shape index: {}]
  %s11 = inlined_call_operand.vmem [shape: bf16[128,128], index: 11, kind: input, shape index: {}]
  %s12 = inlined_call_operand.vmem [shape: f32[1,128], index: 12, kind: input, shape index: {}]
  %s13 = inlined_call_operand.vmem [shape: f32[512,128], index: 13, kind: output, shape index: {}]
  %s14 = sld [smem:[#allocation0]]
  $region85: #{net_forward.1} parent=0
    _
  %s16 = ssub.s32 1, %s14
  %s17 = scalar_select 0, %s16, %s14
  loop: start=0, step=1, limit=4
  $region2: #{net_forward.1} parent=0 // loop_pre_header
    _
  $region3: #{net_forward.1} parent=0 // loop_header
    %s19 = sphi 0, %s23
    %p20 = scmp.ge.s32.totalorder %s19, 4
    %s29 = sphi 0, %s31
    %s32 = sphi 0, %s29
    %s33 = sphi 0, %s32
    %s49 = sphi 0, %s33
    %s53 = sphi 0, %s53
    %s55 = sphi 0, %s53
    %s56 = sphi 0, %s55
    %s70 = sphi 0, %s56
    %s74 = sphi 0, %s74
    %s76 = sphi 0, %s74
    %s77 = sphi 0, %s76
    %s91 = sphi 0, %s77
    %s95 = sphi 0, %s95
    %s97 = sphi 0, %s95
    %s98 = sphi 0, %s97
    %s112 = sphi 0, %s98
    %s116 = sphi 0, %s116
    %s118 = sphi 0, %s116
    %s119 = sphi 0, %s118
    %s133 = sphi 0, %s119
    %s137 = sphi 0, %s137
    %s139 = sphi 0, %s137
    %s140 = sphi 0, %s139
    %s154 = sphi 0, %s140
    %s158 = sphi 0, %s158
    %s160 = sphi 0, %s158
    %s161 = sphi 0, %s160
    %s175 = sphi 0, %s161
    %s179 = sphi 0, %s179
    %s181 = sphi 0, %s179
    %s182 = sphi 0, %s181
    %s196 = sphi 0, %s182
    %s200 = sphi 0, %s200
    %s202 = sphi 0, %s200
    %s203 = sphi 0, %s202
    %s217 = sphi 0, %s203
    %s221 = sphi 0, %s221
    %s223 = sphi 0, %s221
    %s224 = sphi 0, %s223
    %s238 = sphi 0, %s224
    %s242 = sphi 0, %s242
    %s244 = sphi 0, %s242
    %s245 = sphi 0, %s244
    %s259 = sphi 0, %s245
    %s263 = sphi 0, %s263
    %s265 = sphi 0, %s263
    %s266 = sphi 0, %s265
    %s280 = sphi 0, %s266
    %s284 = sphi 0, %s284
    %s286 = sphi 0, %s284
    %s287 = sphi 0, %s286
    %s301 = sphi 0, %s287
    %s307 = sphi 0, %s309
    %s310 = sphi 0, %s307
    %s311 = sphi 0, %s310
    %s327 = sphi 0, %s311
  $region4: #{net_forward.1} parent=0 // loop_header_branch
    %22 = sbr.rel (%p20) target = $region8
  $region5: #{net_forward.1} parent=0 // loop_body
    %s24 = ssub.s32 %s19, 1
    %s25 = ssub.s32 %s19, 2
    %s26 = sadd.s32 %s19, 1
    %s27 = ssub.s32 %s19, %s26
    %p28 = scmp.eq.s32.totalorder %s27, 0
    %s30 = sadd.s32 %s29, 1
    %s31 = scalar_select %p28, %s29, %s30
    %p34 = pneg %p28
    %p35 = scmp.eq.s32.totalorder %s19, 1
    %p36 = por %p34, %p35
    %p37 = scmp.ne.s32.totalorder %s29, %s32
    %p38 = scmp.eq.s32.totalorder %s19, 0
    %p39 = por %p37, %p38
    %p40 = scmp.ne.s32.totalorder %s29, %s32
    %p41 = scmp.eq.s32.totalorder %s24, 1
    %p42 = por %p40, %p41
    %p43 = scmp.ne.s32.totalorder %s32, %s33
    %p44 = scmp.eq.s32.totalorder %s24, 0
    %p45 = por %p43, %p44
    %p46 = scmp.ne.s32.totalorder %s32, %s33
    %p47 = scmp.eq.s32.totalorder %s25, 1
    %p48 = por %p46, %p47
    %p50 = scmp.ne.s32.totalorder %s33, %s49
    %p51 = scmp.eq.s32.totalorder %s25, 0
    %p52 = por %p50, %p51
    %s54 = sadd.s32 %s53, 1
    %p57 = scmp.eq.s32.totalorder %s19, 1
    %p58 = scmp.ne.s32.totalorder %s53, %s55
    %p59 = scmp.eq.s32.totalorder %s19, 0
    %p60 = por %p58, %p59
    %p61 = scmp.ne.s32.totalorder %s53, %s55
    %p62 = scmp.eq.s32.totalorder %s24, 1
    %p63 = por %p61, %p62
    %p64 = scmp.ne.s32.totalorder %s55, %s56
    %p65 = scmp.eq.s32.totalorder %s24, 0
    %p66 = por %p64, %p65
    %p67 = scmp.ne.s32.totalorder %s55, %s56
    %p68 = scmp.eq.s32.totalorder %s25, 1
    %p69 = por %p67, %p68
    %p71 = scmp.ne.s32.totalorder %s56, %s70
    %p72 = scmp.eq.s32.totalorder %s25, 0
    %p73 = por %p71, %p72
    %s75 = sadd.s32 %s74, 1
    %p78 = scmp.eq.s32.totalorder %s19, 1
    %p79 = scmp.ne.s32.totalorder %s74, %s76
    %p80 = scmp.eq.s32.totalorder %s19, 0
    %p81 = por %p79, %p80
    %p82 = scmp.ne.s32.totalorder %s74, %s76
    %p83 = scmp.eq.s32.totalorder %s24, 1
    %p84 = por %p82, %p83
    %p85 = scmp.ne.s32.totalorder %s76, %s77
    %p86 = scmp.eq.s32.totalorder %s24, 0
    %p87 = por %p85, %p86
    %p88 = scmp.ne.s32.totalorder %s76, %s77
    %p89 = scmp.eq.s32.totalorder %s25, 1
    %p90 = por %p88, %p89
    %p92 = scmp.ne.s32.totalorder %s77, %s91
    %p93 = scmp.eq.s32.totalorder %s25, 0
    %p94 = por %p92, %p93
    %s96 = sadd.s32 %s95, 1
    %p99 = scmp.eq.s32.totalorder %s19, 1
    %p100 = scmp.ne.s32.totalorder %s95, %s97
    %p101 = scmp.eq.s32.totalorder %s19, 0
    %p102 = por %p100, %p101
    %p103 = scmp.ne.s32.totalorder %s95, %s97
    %p104 = scmp.eq.s32.totalorder %s24, 1
    %p105 = por %p103, %p104
    %p106 = scmp.ne.s32.totalorder %s97, %s98
    %p107 = scmp.eq.s32.totalorder %s24, 0
    %p108 = por %p106, %p107
    %p109 = scmp.ne.s32.totalorder %s97, %s98
    %p110 = scmp.eq.s32.totalorder %s25, 1
    %p111 = por %p109, %p110
    %p113 = scmp.ne.s32.totalorder %s98, %s112
    %p114 = scmp.eq.s32.totalorder %s25, 0
    %p115 = por %p113, %p114
    %s117 = sadd.s32 %s116, 1
    %p120 = scmp.eq.s32.totalorder %s19, 1
    %p121 = scmp.ne.s32.totalorder %s116, %s118
    %p122 = scmp.eq.s32.totalorder %s19, 0
    %p123 = por %p121, %p122
    %p124 = scmp.ne.s32.totalorder %s116, %s118
    %p125 = scmp.eq.s32.totalorder %s24, 1
    %p126 = por %p124, %p125
    %p127 = scmp.ne.s32.totalorder %s118, %s119
    %p128 = scmp.eq.s32.totalorder %s24, 0
    %p129 = por %p127, %p128
    %p130 = scmp.ne.s32.totalorder %s118, %s119
    %p131 = scmp.eq.s32.totalorder %s25, 1
    %p132 = por %p130, %p131
    %p134 = scmp.ne.s32.totalorder %s119, %s133
    %p135 = scmp.eq.s32.totalorder %s25, 0
    %p136 = por %p134, %p135
    %s138 = sadd.s32 %s137, 1
    %p141 = scmp.eq.s32.totalorder %s19, 1
    %p142 = scmp.ne.s32.totalorder %s137, %s139
    %p143 = scmp.eq.s32.totalorder %s19, 0
    %p144 = por %p142, %p143
    %p145 = scmp.ne.s32.totalorder %s137, %s139
    %p146 = scmp.eq.s32.totalorder %s24, 1
    %p147 = por %p145, %p146
    %p148 = scmp.ne.s32.totalorder %s139, %s140
    %p149 = scmp.eq.s32.totalorder %s24, 0
    %p150 = por %p148, %p149
    %p151 = scmp.ne.s32.totalorder %s139, %s140
    %p152 = scmp.eq.s32.totalorder %s25, 1
    %p153 = por %p151, %p152
    %p155 = scmp.ne.s32.totalorder %s140, %s154
    %p156 = scmp.eq.s32.totalorder %s25, 0
    %p157 = por %p155, %p156
    %s159 = sadd.s32 %s158, 1
    %p162 = scmp.eq.s32.totalorder %s19, 1
    %p163 = scmp.ne.s32.totalorder %s158, %s160
    %p164 = scmp.eq.s32.totalorder %s19, 0
    %p165 = por %p163, %p164
    %p166 = scmp.ne.s32.totalorder %s158, %s160
    %p167 = scmp.eq.s32.totalorder %s24, 1
    %p168 = por %p166, %p167
    %p169 = scmp.ne.s32.totalorder %s160, %s161
    %p170 = scmp.eq.s32.totalorder %s24, 0
    %p171 = por %p169, %p170
    %p172 = scmp.ne.s32.totalorder %s160, %s161
    %p173 = scmp.eq.s32.totalorder %s25, 1
    %p174 = por %p172, %p173
    %p176 = scmp.ne.s32.totalorder %s161, %s175
    %p177 = scmp.eq.s32.totalorder %s25, 0
    %p178 = por %p176, %p177
    %s180 = sadd.s32 %s179, 1
    %p183 = scmp.eq.s32.totalorder %s19, 1
    %p184 = scmp.ne.s32.totalorder %s179, %s181
    %p185 = scmp.eq.s32.totalorder %s19, 0
    %p186 = por %p184, %p185
    %p187 = scmp.ne.s32.totalorder %s179, %s181
    %p188 = scmp.eq.s32.totalorder %s24, 1
    %p189 = por %p187, %p188
    %p190 = scmp.ne.s32.totalorder %s181, %s182
    %p191 = scmp.eq.s32.totalorder %s24, 0
    %p192 = por %p190, %p191
    %p193 = scmp.ne.s32.totalorder %s181, %s182
    %p194 = scmp.eq.s32.totalorder %s25, 1
    %p195 = por %p193, %p194
    %p197 = scmp.ne.s32.totalorder %s182, %s196
    %p198 = scmp.eq.s32.totalorder %s25, 0
    %p199 = por %p197, %p198
    %s201 = sadd.s32 %s200, 1
    %p204 = scmp.eq.s32.totalorder %s19, 1
    %p205 = scmp.ne.s32.totalorder %s200, %s202
    %p206 = scmp.eq.s32.totalorder %s19, 0
    %p207 = por %p205, %p206
    %p208 = scmp.ne.s32.totalorder %s200, %s202
    %p209 = scmp.eq.s32.totalorder %s24, 1
    %p210 = por %p208, %p209
    %p211 = scmp.ne.s32.totalorder %s202, %s203
    %p212 = scmp.eq.s32.totalorder %s24, 0
    %p213 = por %p211, %p212
    %p214 = scmp.ne.s32.totalorder %s202, %s203
    %p215 = scmp.eq.s32.totalorder %s25, 1
    %p216 = por %p214, %p215
    %p218 = scmp.ne.s32.totalorder %s203, %s217
    %p219 = scmp.eq.s32.totalorder %s25, 0
    %p220 = por %p218, %p219
    %s222 = sadd.s32 %s221, 1
    %p225 = scmp.eq.s32.totalorder %s19, 1
    %p226 = scmp.ne.s32.totalorder %s221, %s223
    %p227 = scmp.eq.s32.totalorder %s19, 0
    %p228 = por %p226, %p227
    %p229 = scmp.ne.s32.totalorder %s221, %s223
    %p230 = scmp.eq.s32.totalorder %s24, 1
    %p231 = por %p229, %p230
    %p232 = scmp.ne.s32.totalorder %s223, %s224
    %p233 = scmp.eq.s32.totalorder %s24, 0
    %p234 = por %p232, %p233
    %p235 = scmp.ne.s32.totalorder %s223, %s224
    %p236 = scmp.eq.s32.totalorder %s25, 1
    %p237 = por %p235, %p236
    %p239 = scmp.ne.s32.totalorder %s224, %s238
    %p240 = scmp.eq.s32.totalorder %s25, 0
    %p241 = por %p239, %p240
    %s243 = sadd.s32 %s242, 1
    %p246 = scmp.eq.s32.totalorder %s19, 1
    %p247 = scmp.ne.s32.totalorder %s242, %s244
    %p248 = scmp.eq.s32.totalorder %s19, 0
    %p249 = por %p247, %p248
    %p250 = scmp.ne.s32.totalorder %s242, %s244
    %p251 = scmp.eq.s32.totalorder %s24, 1
    %p252 = por %p250, %p251
    %p253 = scmp.ne.s32.totalorder %s244, %s245
    %p254 = scmp.eq.s32.totalorder %s24, 0
    %p255 = por %p253, %p254
    %p256 = scmp.ne.s32.totalorder %s244, %s245
    %p257 = scmp.eq.s32.totalorder %s25, 1
    %p258 = por %p256, %p257
    %p260 = scmp.ne.s32.totalorder %s245, %s259
    %p261 = scmp.eq.s32.totalorder %s25, 0
    %p262 = por %p260, %p261
    %s264 = sadd.s32 %s263, 1
    %p267 = scmp.eq.s32.totalorder %s19, 1
    %p268 = scmp.ne.s32.totalorder %s263, %s265
    %p269 = scmp.eq.s32.totalorder %s19, 0
    %p270 = por %p268, %p269
    %p271 = scmp.ne.s32.totalorder %s263, %s265
    %p272 = scmp.eq.s32.totalorder %s24, 1
    %p273 = por %p271, %p272
    %p274 = scmp.ne.s32.totalorder %s265, %s266
    %p275 = scmp.eq.s32.totalorder %s24, 0
    %p276 = por %p274, %p275
    %p277 = scmp.ne.s32.totalorder %s265, %s266
    %p278 = scmp.eq.s32.totalorder %s25, 1
    %p279 = por %p277, %p278
    %p281 = scmp.ne.s32.totalorder %s266, %s280
    %p282 = scmp.eq.s32.totalorder %s25, 0
    %p283 = por %p281, %p282
    %s285 = sadd.s32 %s284, 1
    %p288 = scmp.eq.s32.totalorder %s19, 1
    %p289 = scmp.ne.s32.totalorder %s284, %s286
    %p290 = scmp.eq.s32.totalorder %s19, 0
    %p291 = por %p289, %p290
    %p292 = scmp.ne.s32.totalorder %s284, %s286
    %p293 = scmp.eq.s32.totalorder %s24, 1
    %p294 = por %p292, %p293
    %p295 = scmp.ne.s32.totalorder %s286, %s287
    %p296 = scmp.eq.s32.totalorder %s24, 0
    %p297 = por %p295, %p296
    %p298 = scmp.ne.s32.totalorder %s286, %s287
    %p299 = scmp.eq.s32.totalorder %s25, 1
    %p300 = por %p298, %p299
    %p302 = scmp.ne.s32.totalorder %s287, %s301
    %p303 = scmp.eq.s32.totalorder %s25, 0
    %p304 = por %p302, %p303
    %s305 = ssub.s32 %s19, %s26
    %p306 = scmp.eq.s32.totalorder %s305, 0
    %s308 = sadd.s32 %s307, 1
    %s309 = scalar_select %p306, %s307, %s308
    %p312 = pneg %p306
    %p313 = scmp.eq.s32.totalorder %s19, 1
    %p314 = por %p312, %p313
    %p315 = scmp.ne.s32.totalorder %s307, %s310
    %p316 = scmp.eq.s32.totalorder %s19, 0
    %p317 = por %p315, %p316
    %p318 = scmp.ne.s32.totalorder %s307, %s310
    %p319 = scmp.eq.s32.totalorder %s24, 1
    %p320 = por %p318, %p319
    %p321 = scmp.ne.s32.totalorder %s310, %s311
    %p322 = scmp.eq.s32.totalorder %s24, 0
    %p323 = por %p321, %p322
    %p324 = scmp.ne.s32.totalorder %s310, %s311
    %p325 = scmp.eq.s32.totalorder %s25, 1
    %p326 = por %p324, %p325
    %p328 = scmp.ne.s32.totalorder %s311, %s327
    %p329 = scmp.eq.s32.totalorder %s25, 0
    %p330 = por %p328, %p329
    %p331 = scmp.le.s32.totalorder 1, %s19
    %p332 = scmp.lt.s32.totalorder %s19, 3
    %p333 = pnand %p331, %p332
    %p334 = pneg %p333
    // Predicated region
    $region9: #{net_forward.1} parent=5 // pred_check
      _
    $region10: #{net_forward.1} parent=5 // pred_check_branch
      %336 = sbr.rel (%p333) target = $region12
    $region11: #{net_forward.1} parent=5 // pred_region
      %s337 = ssub.s32 %s19, 1
      // Predicated region
      $region13: #{net_forward.1} parent=11 // pred_check
        %p338 = pneg %p66
      $region14: #{net_forward.1} parent=11 // pred_check_branch
        %340 = sbr.rel (%p338) target = $region16
      $region15: #{net_forward.1} parent=11 // pred_region
        _
      $region16: #{net_forward.1} parent=11 // pred_fallthru
        _
      // Predicated region
      $region17: #{net_forward.1} parent=11 // pred_check
        %p341 = pneg %p87
      $region18: #{net_forward.1} parent=11 // pred_check_branch
        %343 = sbr.rel (%p341) target = $region20
      $region19: #{net_forward.1} parent=11 // pred_region
        _
      $region20: #{net_forward.1} parent=11 // pred_fallthru
        _
      // Predicated region
      $region21: #{net_forward.1} parent=11 // pred_check
        %p344 = pneg %p108
      $region22: #{net_forward.1} parent=11 // pred_check_branch
        %346 = sbr.rel (%p344) target = $region24
      $region23: #{net_forward.1} parent=11 // pred_region
        _
      $region24: #{net_forward.1} parent=11 // pred_fallthru
        _
      // Predicated region
      $region25: #{net_forward.1} parent=11 // pred_check
        %p347 = pneg %p129
      $region26: #{net_forward.1} parent=11 // pred_check_branch
        %349 = sbr.rel (%p347) target = $region28
      $region27: #{net_forward.1} parent=11 // pred_region
        _
      $region28: #{net_forward.1} parent=11 // pred_fallthru
        _
      // Predicated region
      $region29: #{net_forward.1} parent=11 // pred_check
        %p350 = pneg %p150
      $region30: #{net_forward.1} parent=11 // pred_check_branch
        %352 = sbr.rel (%p350) target = $region32
      $region31: #{net_forward.1} parent=11 // pred_region
        _
      $region32: #{net_forward.1} parent=11 // pred_fallthru
        _
      // Predicated region
      $region33: #{net_forward.1} parent=11 // pred_check
        %p353 = pneg %p171
      $region34: #{net_forward.1} parent=11 // pred_check_branch
        %355 = sbr.rel (%p353) target = $region36
      $region35: #{net_forward.1} parent=11 // pred_region
        _
      $region36: #{net_forward.1} parent=11 // pred_fallthru
        _
      // Predicated region
      $region37: #{net_forward.1} parent=11 // pred_check
        %p356 = pneg %p192
      $region38: #{net_forward.1} parent=11 // pred_check_branch
        %358 = sbr.rel (%p356) target = $region40
      $region39: #{net_forward.1} parent=11 // pred_region
        _
      $region40: #{net_forward.1} parent=11 // pred_fallthru
        _
      // Predicated region
      $region41: #{net_forward.1} parent=11 // pred_check
        %p359 = pneg %p213
      $region42: #{net_forward.1} parent=11 // pred_check_branch
        %361 = sbr.rel (%p359) target = $region44
      $region43: #{net_forward.1} parent=11 // pred_region
        _
      $region44: #{net_forward.1} parent=11 // pred_fallthru
        _
      // Predicated region
      $region45: #{net_forward.1} parent=11 // pred_check
        %p362 = pneg %p234
      $region46: #{net_forward.1} parent=11 // pred_check_branch
        %364 = sbr.rel (%p362) target = $region48
      $region47: #{net_forward.1} parent=11 // pred_region
        _
      $region48: #{net_forward.1} parent=11 // pred_fallthru
        _
      // Predicated region
      $region49: #{net_forward.1} parent=11 // pred_check
        %p365 = pneg %p255
      $region50: #{net_forward.1} parent=11 // pred_check_branch
        %367 = sbr.rel (%p365) target = $region52
      $region51: #{net_forward.1} parent=11 // pred_region
        _
      $region52: #{net_forward.1} parent=11 // pred_fallthru
        _
      // Predicated region
      $region53: #{net_forward.1} parent=11 // pred_check
        %p368 = pneg %p276
      $region54: #{net_forward.1} parent=11 // pred_check_branch
        %370 = sbr.rel (%p368) target = $region56
      $region55: #{net_forward.1} parent=11 // pred_region
        _
      $region56: #{net_forward.1} parent=11 // pred_fallthru
        _
      // Predicated region
      $region57: #{net_forward.1} parent=11 // pred_check
        %p371 = pneg %p297
      $region58: #{net_forward.1} parent=11 // pred_check_branch
        %373 = sbr.rel (%p371) target = $region60
      $region59: #{net_forward.1} parent=11 // pred_region
        _
      $region60: #{net_forward.1} parent=11 // pred_fallthru
        _
    $region12: #{net_forward.1} parent=5 // pred_fallthru
      _
    %p374 = scmp.lt.s32.totalorder %s19, 2
    // Predicated region
    $region61: #{net_forward.1} parent=5 // pred_check
      %p375 = pneg %p374
    $region62: #{net_forward.1} parent=5 // pred_check_branch
      %377 = sbr.rel (%p375) target = $region64
    $region63: #{net_forward.1} parent=5 // pred_region
      // Predicated region
      $region65: #{net_forward.1} parent=63 // pred_check
        %p378 = pneg %p39
      $region66: #{net_forward.1} parent=63 // pred_check_branch
        %380 = sbr.rel (%p378) target = $region68
      $region67: #{net_forward.1} parent=63 // pred_region
        %s381 = smul.u32 32, %s19
        %p382 = scmp.lt.s32.totalorder %s381, 63
        %s383 = scalar_select %p382, %s381, 63
        %s384 = smul.addr %s383, 7
        %s385 = smul.addr %s384, 4
        %s386 = scalar_lea.vmem %s0, %s385
        %s387 = smul.u32 32, %s19
      $region68: #{net_forward.1} parent=63 // pred_fallthru
        _
    $region64: #{net_forward.1} parent=5 // pred_fallthru
      _
    %p388 = scmp.le.s32.totalorder 1, %s19
    %p389 = scmp.lt.s32.totalorder %s19, 3
    %p390 = pnand %p388, %p389
    %p391 = pneg %p390
    // Predicated region
    $region69: #{net_forward.1} parent=5 // pred_check
      _
    $region70: #{net_forward.1} parent=5 // pred_check_branch
      %393 = sbr.rel (%p390) target = $region72
    $region71: #{net_forward.1} parent=5 // pred_region
      %s394 = ssub.s32 %s19, 1
      %s395 = smul.u32 32, %s24
      %p396 = scmp.lt.s32.totalorder %s395, 63
      %s397 = scalar_select %p396, %s395, 63
      %s398 = smul.addr %s397, 7
      %s399 = smul.addr %s398, 4
      %s400 = scalar_lea.vmem %s0, %s399
      %p401 = pneg %p45
      %p402 = pneg %p42
      %p403 = pneg %p66
      %p404 = pneg %p63
      %p405 = pneg %p87
      %p406 = pneg %p84
      %p407 = pneg %p108
      %p408 = pneg %p105
      %p409 = pneg %p129
      %p410 = pneg %p126
      %p411 = pneg %p150
      %p412 = pneg %p147
      %p413 = pneg %p171
      %p414 = pneg %p168
      %p415 = pneg %p192
      %p416 = pneg %p189
      %p417 = pneg %p213
      %p418 = pneg %p210
      %p419 = pneg %p234
      %p420 = pneg %p231
      %p421 = pneg %p255
      %p422 = pneg %p252
      %p423 = pneg %p276
      %p424 = pneg %p273
      %p425 = pneg %p297
      %p426 = pneg %p294
      %p427 = pneg %p323
      %p428 = pneg %p320
      %s429 = smul.u32 32, %s24
      %p430 = scmp.lt.s32.totalorder %s429, 63
      %s431 = scalar_select %p430, %s429, 63
      %s432 = smul.addr %s431, 8
      %s433 = scalar_lea.vmem %s13, %s432
      %s434 = smul.u32 32, %s24
      %p435 = scmp.lt.s32.totalorder %s434, 63
      %s436 = scalar_select %p435, %s434, 63
      %s437 = smul.addr %s436, 7
      %s438 = smul.addr %s437, 4
      %s439 = scalar_lea.vmem %s0, %s438
      %s440 = smul.u32 32, %s24
      %s441 = smul.u32 32, %s24
      %p442 = scmp.lt.s32.totalorder %s441, 63
      %s443 = scalar_select %p442, %s441, 63
      %s444 = smul.addr %s443, 8
      %s445 = scalar_lea.vmem %s13, %s444
      %s446 = smul.u32 32, %s24
      %v448 = vld [vmem:[%s439] sm:$0xff]
      %v449 = vld [vmem:[%s439 + $0x8] sm:$0xff]
      %v450 = vld [vmem:[%s439 + $0x10] sm:$0xff]
      %v451 = vld [vmem:[%s439 + $0x18] sm:$0xf]
      %v452 = vld [vmem:[%s439 + $0x1c] sm:$0xff]
      %v453 = vld [vmem:[%s439 + $0x24] sm:$0xff]
      %v454 = vld [vmem:[%s439 + $0x2c] sm:$0xff]
      %v455 = vld [vmem:[%s439 + $0x34] sm:$0xf]
      %v456 = vld [vmem:[%s439 + $0x38] sm:$0xff]
      %v457 = vld [vmem:[%s439 + $0x40] sm:$0xff]
      %v458 = vld [vmem:[%s439 + $0x48] sm:$0xff]
      %v459 = vld [vmem:[%s439 + $0x50] sm:$0xf]
      %v460 = vld [vmem:[%s439 + $0x54] sm:$0xff]
      %v461 = vld [vmem:[%s439 + $0x5c] sm:$0xff]
      %v462 = vld [vmem:[%s439 + $0x64] sm:$0xff]
      %v463 = vld [vmem:[%s439 + $0x6c] sm:$0xf]
      %v464 = vld [vmem:[%s439 + $0x70] sm:$0xff]
      %v465 = vld [vmem:[%s439 + $0x78] sm:$0xff]
      %v466 = vld [vmem:[%s439 + $0x80] sm:$0xff]
      %v467 = vld [vmem:[%s439 + $0x88] sm:$0xf]
      %v468 = vld [vmem:[%s439 + $0x8c] sm:$0xff]
      %v469 = vld [vmem:[%s439 + $0x94] sm:$0xff]
      %v470 = vld [vmem:[%s439 + $0x9c] sm:$0xff]
      %v471 = vld [vmem:[%s439 + $0xa4] sm:$0xf]
      %v472 = vld [vmem:[%s439 + $0xa8] sm:$0xff]
      %v473 = vld [vmem:[%s439 + $0xb0] sm:$0xff]
      %v474 = vld [vmem:[%s439 + $0xb8] sm:$0xff]
      %v475 = vld [vmem:[%s439 + $0xc0] sm:$0xf]
      %v476 = vld [vmem:[%s439 + $0xc4] sm:$0xff]
      %v477 = vld [vmem:[%s439 + $0xcc] sm:$0xff]
      %v478 = vld [vmem:[%s439 + $0xd4] sm:$0xff]
      %v479 = vld [vmem:[%s439 + $0xdc] sm:$0xf]
      %v480 = vld [vmem:[%s439 + $0xe0] sm:$0xff]
      %v481 = vld [vmem:[%s439 + $0xe8] sm:$0xff]
      %v482 = vld [vmem:[%s439 + $0xf0] sm:$0xff]
      %v483 = vld [vmem:[%s439 + $0xf8] sm:$0xf]
      %v484 = vld [vmem:[%s439 + $0xfc] sm:$0xff]
      %v485 = vld [vmem:[%s439 + $0x104] sm:$0xff]
      %v486 = vld [vmem:[%s439 + $0x10c] sm:$0xff]
      %v487 = vld [vmem:[%s439 + $0x114] sm:$0xf]
      %v488 = vld [vmem:[%s439 + $0x118] sm:$0xff]
      %v489 = vld [vmem:[%s439 + $0x120] sm:$0xff]
      %v490 = vld [vmem:[%s439 + $0x128] sm:$0xff]
      %v491 = vld [vmem:[%s439 + $0x130] sm:$0xf]
      %v492 = vld [vmem:[%s439 + $0x134] sm:$0xff]
      %v493 = vld [vmem:[%s439 + $0x13c] sm:$0xff]
      %v494 = vld [vmem:[%s439 + $0x144] sm:$0xff]
      %v495 = vld [vmem:[%s439 + $0x14c] sm:$0xf]
      %v496 = vld [vmem:[%s439 + $0x150] sm:$0xff]
      %v497 = vld [vmem:[%s439 + $0x158] sm:$0xff]
      %v498 = vld [vmem:[%s439 + $0x160] sm:$0xff]
      %v499 = vld [vmem:[%s439 + $0x168] sm:$0xf]
      %v500 = vld [vmem:[%s439 + $0x16c] sm:$0xff]
      %v501 = vld [vmem:[%s439 + $0x174] sm:$0xff]
      %v502 = vld [vmem:[%s439 + $0x17c] sm:$0xff]
      %v503 = vld [vmem:[%s439 + $0x184] sm:$0xf]
      %v504 = vld [vmem:[%s439 + $0x188] sm:$0xff]
      %v505 = vld [vmem:[%s439 + $0x190] sm:$0xff]
      %v506 = vld [vmem:[%s439 + $0x198] sm:$0xff]
      %v507 = vld [vmem:[%s439 + $0x1a0] sm:$0xf]
      %v508 = vld [vmem:[%s439 + $0x1a4] sm:$0xff]
      %v509 = vld [vmem:[%s439 + $0x1ac] sm:$0xff]
      %v510 = vld [vmem:[%s439 + $0x1b4] sm:$0xff]
      %v511 = vld [vmem:[%s439 + $0x1bc] sm:$0xf]
      %v512 = vld [vmem:[%s439 + $0x1c0] sm:$0xff]
      %v513 = vld [vmem:[%s439 + $0x1c8] sm:$0xff]
      %v514 = vld [vmem:[%s439 + $0x1d0] sm:$0xff]
      %v515 = vld [vmem:[%s439 + $0x1d8] sm:$0xf]
      %v516 = vld [vmem:[%s439 + $0x1dc] sm:$0xff]
      %v517 = vld [vmem:[%s439 + $0x1e4] sm:$0xff]
      %v518 = vld [vmem:[%s439 + $0x1ec] sm:$0xff]
      %v519 = vld [vmem:[%s439 + $0x1f4] sm:$0xf]
      %v520 = vld [vmem:[%s439 + $0x1f8] sm:$0xff]
      %v521 = vld [vmem:[%s439 + $0x200] sm:$0xff]
      %v522 = vld [vmem:[%s439 + $0x208] sm:$0xff]
      %v523 = vld [vmem:[%s439 + $0x210] sm:$0xf]
      %v524 = vld [vmem:[%s439 + $0x214] sm:$0xff]
      %v525 = vld [vmem:[%s439 + $0x21c] sm:$0xff]
      %v526 = vld [vmem:[%s439 + $0x224] sm:$0xff]
      %v527 = vld [vmem:[%s439 + $0x22c] sm:$0xf]
      %v528 = vld [vmem:[%s439 + $0x230] sm:$0xff]
      %v529 = vld [vmem:[%s439 + $0x238] sm:$0xff]
      %v530 = vld [vmem:[%s439 + $0x240] sm:$0xff]
      %v531 = vld [vmem:[%s439 + $0x248] sm:$0xf]
      %v532 = vld [vmem:[%s439 + $0x24c] sm:$0xff]
      %v533 = vld [vmem:[%s439 + $0x254] sm:$0xff]
      %v534 = vld [vmem:[%s439 + $0x25c] sm:$0xff]
      %v535 = vld [vmem:[%s439 + $0x264] sm:$0xf]
      %v536 = vld [vmem:[%s439 + $0x268] sm:$0xff]
      %v537 = vld [vmem:[%s439 + $0x270] sm:$0xff]
      %v538 = vld [vmem:[%s439 + $0x278] sm:$0xff]
      %v539 = vld [vmem:[%s439 + $0x280] sm:$0xf]
      %v540 = vld [vmem:[%s439 + $0x284] sm:$0xff]
      %v541 = vld [vmem:[%s439 + $0x28c] sm:$0xff]
      %v542 = vld [vmem:[%s439 + $0x294] sm:$0xff]
      %v543 = vld [vmem:[%s439 + $0x29c] sm:$0xf]
      %v544 = vld [vmem:[%s439 + $0x2a0] sm:$0xff]
      %v545 = vld [vmem:[%s439 + $0x2a8] sm:$0xff]
      %v546 = vld [vmem:[%s439 + $0x2b0] sm:$0xff]
      %v547 = vld [vmem:[%s439 + $0x2b8] sm:$0xf]
      %v548 = vld [vmem:[%s439 + $0x2bc] sm:$0xff]
      %v549 = vld [vmem:[%s439 + $0x2c4] sm:$0xff]
      %v550 = vld [vmem:[%s439 + $0x2cc] sm:$0xff]
      %v551 = vld [vmem:[%s439 + $0x2d4] sm:$0xf]
      %v552 = vld [vmem:[%s439 + $0x2d8] sm:$0xff]
      %v553 = vld [vmem:[%s439 + $0x2e0] sm:$0xff]
      %v554 = vld [vmem:[%s439 + $0x2e8] sm:$0xff]
      %v555 = vld [vmem:[%s439 + $0x2f0] sm:$0xf]
      %v556 = vld [vmem:[%s439 + $0x2f4] sm:$0xff]
      %v557 = vld [vmem:[%s439 + $0x2fc] sm:$0xff]
      %v558 = vld [vmem:[%s439 + $0x304] sm:$0xff]
      %v559 = vld [vmem:[%s439 + $0x30c] sm:$0xf]
      %v560 = vld [vmem:[%s439 + $0x310] sm:$0xff]
      %v561 = vld [vmem:[%s439 + $0x318] sm:$0xff]
      %v562 = vld [vmem:[%s439 + $0x320] sm:$0xff]
      %v563 = vld [vmem:[%s439 + $0x328] sm:$0xf]
      %v564 = vld [vmem:[%s439 + $0x32c] sm:$0xff]
      %v565 = vld [vmem:[%s439 + $0x334] sm:$0xff]
      %v566 = vld [vmem:[%s439 + $0x33c] sm:$0xff]
      %v567 = vld [vmem:[%s439 + $0x344] sm:$0xf]
      %v568 = vld [vmem:[%s439 + $0x348] sm:$0xff]
      %v569 = vld [vmem:[%s439 + $0x350] sm:$0xff]
      %v570 = vld [vmem:[%s439 + $0x358] sm:$0xff]
      %v571 = vld [vmem:[%s439 + $0x360] sm:$0xf]
      %v572 = vld [vmem:[%s439 + $0x364] sm:$0xff]
      %v573 = vld [vmem:[%s439 + $0x36c] sm:$0xff]
      %v574 = vld [vmem:[%s439 + $0x374] sm:$0xff]
      %v575 = vld [vmem:[%s439 + $0x37c] sm:$0xf]
      %v576 = vld [vmem:[%s1] sm:$0xf]
      %v577 = vld [vmem:[%s1 + $0x4] sm:$0xf]
      %v578 = vld [vmem:[%s1 + $0x8] sm:$0xf]
      %v579 = vld [vmem:[%s1 + $0xc] sm:$0xf]
      %v580 = vld [vmem:[%s1 + $0x10] sm:$0xf]
      %v581 = vld [vmem:[%s1 + $0x14] sm:$0xf]
      %v582 = vld [vmem:[%s1 + $0x18] sm:$0xf]
      %v583 = vld [vmem:[%s1 + $0x1c] sm:$0xf]
      %v584 = vld [vmem:[%s1 + $0x20] sm:$0xf]
      %v585 = vld [vmem:[%s1 + $0x24] sm:$0xf]
      %v586 = vld [vmem:[%s1 + $0x28] sm:$0xf]
      %v587 = vld [vmem:[%s1 + $0x2c] sm:$0xf]
      %v588 = vld [vmem:[%s1 + $0x30] sm:$0xf]
      %v589 = vld [vmem:[%s1 + $0x34] sm:$0xf]
      %v590 = vld [vmem:[%s1 + $0x38] sm:$0xf]
      %v591 = vld [vmem:[%s1 + $0x3c] sm:$0xf]
      %v592 = vld [vmem:[%s1 + $0x40] sm:$0xf]
      %v593 = vld [vmem:[%s1 + $0x44] sm:$0xf]
      %v594 = vld [vmem:[%s1 + $0x48] sm:$0xf]
      %v595 = vld [vmem:[%s1 + $0x4c] sm:$0xf]
      %v596 = vld [vmem:[%s1 + $0x50] sm:$0xf]
      %v597 = vld [vmem:[%s1 + $0x54] sm:$0xf]
      %v598 = vld [vmem:[%s1 + $0x58] sm:$0xf]
      %v599 = vld [vmem:[%s1 + $0x5c] sm:$0xf]
      %v600 = vld [vmem:[%s1 + $0x60] sm:$0xf]
      %v601 = vld [vmem:[%s1 + $0x64] sm:$0xf]
      %v602 = vld [vmem:[%s1 + $0x68] sm:$0xf]
      %v603 = vld [vmem:[%s1 + $0x6c] sm:$0xf]
      %v604 = vld [vmem:[%s1 + $0x70] sm:$0xf]
      %v605 = vld [vmem:[%s1 + $0x74] sm:$0xf]
      %v606 = vld [vmem:[%s1 + $0x78] sm:$0xf]
      %v607 = vld [vmem:[%s1 + $0x7c] sm:$0xf]
      %v608 = vld [vmem:[%s1 + $0x80] sm:$0xf]
      %v609 = vld [vmem:[%s1 + $0x84] sm:$0xf]
      %v610 = vld [vmem:[%s1 + $0x88] sm:$0xf]
      %v611 = vld [vmem:[%s1 + $0x8c] sm:$0xf]
      %v612 = vld [vmem:[%s1 + $0x90] sm:$0xf]
      %v613 = vld [vmem:[%s1 + $0x94] sm:$0xf]
      %v614 = vld [vmem:[%s1 + $0x98] sm:$0xf]
      %v615 = vld [vmem:[%s1 + $0x9c] sm:$0xf]
      %v616 = vld [vmem:[%s1 + $0xa0] sm:$0xf]
      %v617 = vld [vmem:[%s1 + $0xa4] sm:$0xf]
      %v618 = vld [vmem:[%s1 + $0xa8] sm:$0xf]
      %v619 = vld [vmem:[%s1 + $0xac] sm:$0xf]
      %v620 = vld [vmem:[%s1 + $0xb0] sm:$0xf]
      %v621 = vld [vmem:[%s1 + $0xb4] sm:$0xf]
      %v622 = vld [vmem:[%s1 + $0xb8] sm:$0xf]
      %v623 = vld [vmem:[%s1 + $0xbc] sm:$0xf]
      %v624 = vld [vmem:[%s1 + $0xc0] sm:$0xf]
      %v625 = vld [vmem:[%s1 + $0xc4] sm:$0xf]
      %v626 = vld [vmem:[%s1 + $0xc8] sm:$0xf]
      %v627 = vld [vmem:[%s1 + $0xcc] sm:$0xf]
      %v628 = vld [vmem:[%s1 + $0xd0] sm:$0xf]
      %v629 = vld [vmem:[%s1 + $0xd4] sm:$0xf]
      %v630 = vld [vmem:[%s1 + $0xd8] sm:$0xf]
      %v631 = vld [vmem:[%s1 + $0xdc] sm:$0xf]
      %v632 = vld [vmem:[%s1 + $0xe0] sm:$0xf]
      %v633 = vld [vmem:[%s1 + $0xe4] sm:$0xf]
      %v634 = vld [vmem:[%s1 + $0xe8] sm:$0xf]
      %v635 = vld [vmem:[%s1 + $0xec] sm:$0xf]
      %v636 = vld [vmem:[%s1 + $0xf0] sm:$0xf]
      %v637 = vld [vmem:[%s1 + $0xf4] sm:$0xf]
      %v638 = vld [vmem:[%s1 + $0xf8] sm:$0xf]
      %v639 = vld [vmem:[%s1 + $0xfc] sm:$0xf]
      %v640 = vld [vmem:[%s1 + $0x100] sm:$0xf]
      %v641 = vld [vmem:[%s1 + $0x104] sm:$0xf]
      %v642 = vld [vmem:[%s1 + $0x108] sm:$0xf]
      %v643 = vld [vmem:[%s1 + $0x10c] sm:$0xf]
      %v644 = vld [vmem:[%s1 + $0x110] sm:$0xf]
      %v645 = vld [vmem:[%s1 + $0x114] sm:$0xf]
      %v646 = vld [vmem:[%s1 + $0x118] sm:$0xf]
      %v647 = vld [vmem:[%s1 + $0x11c] sm:$0xf]
      %v648 = vld [vmem:[%s1 + $0x120] sm:$0xf]
      %v649 = vld [vmem:[%s1 + $0x124] sm:$0xf]
      %v650 = vld [vmem:[%s1 + $0x128] sm:$0xf]
      %v651 = vld [vmem:[%s1 + $0x12c] sm:$0xf]
      %v652 = vld [vmem:[%s1 + $0x130] sm:$0xf]
      %v653 = vld [vmem:[%s1 + $0x134] sm:$0xf]
      %v654 = vld [vmem:[%s1 + $0x138] sm:$0xf]
      %v655 = vld [vmem:[%s1 + $0x13c] sm:$0xf]
      %v656 = vld [vmem:[%s1 + $0x140] sm:$0xf]
      %v657 = vld [vmem:[%s1 + $0x144] sm:$0xf]
      %v658 = vld [vmem:[%s1 + $0x148] sm:$0xf]
      %v659 = vld [vmem:[%s1 + $0x14c] sm:$0xf]
      %v660 = vld [vmem:[%s1 + $0x150] sm:$0xf]
      %v661 = vld [vmem:[%s1 + $0x154] sm:$0xf]
      %v662 = vld [vmem:[%s1 + $0x158] sm:$0xf]
      %v663 = vld [vmem:[%s1 + $0x15c] sm:$0xf]
      %v664 = vld [vmem:[%s1 + $0x160] sm:$0xf]
      %v665 = vld [vmem:[%s1 + $0x164] sm:$0xf]
      %v666 = vld [vmem:[%s1 + $0x168] sm:$0xf]
      %v667 = vld [vmem:[%s1 + $0x16c] sm:$0xf]
      %v668 = vld [vmem:[%s1 + $0x170] sm:$0xf]
      %v669 = vld [vmem:[%s1 + $0x174] sm:$0xf]
      %v670 = vld [vmem:[%s1 + $0x178] sm:$0xf]
      %v671 = vld [vmem:[%s1 + $0x17c] sm:$0xf]
      %v672 = vld [vmem:[%s1 + $0x180] sm:$0xf]
      %v673 = vld [vmem:[%s1 + $0x184] sm:$0xf]
      %v674 = vld [vmem:[%s2] sm:$0x1]
      %v676 = vperm.slane %v674, 0
      %v806 = vunpack.c.l.b16 %v448
      %v807 = vunpack.c.h.b16 %v448
      %v808 = vunpack.c.l.b16 %v449
      %v809 = vunpack.c.h.b16 %v449
      %v810 = vunpack.c.l.b16 %v450
      %v811 = vunpack.c.h.b16 %v450
      %v812 = vunpack.c.l.b16 %v451
      %v813 = vunpack.c.l.b16 %v452
      %v814 = vunpack.c.h.b16 %v452
      %v815 = vunpack.c.l.b16 %v453
      %v816 = vunpack.c.h.b16 %v453
      %v817 = vunpack.c.l.b16 %v454
      %v818 = vunpack.c.h.b16 %v454
      %v819 = vunpack.c.l.b16 %v455
      %v820 = vunpack.c.l.b16 %v456
      %v821 = vunpack.c.h.b16 %v456
      %v822 = vunpack.c.l.b16 %v457
      %v823 = vunpack.c.h.b16 %v457
      %v824 = vunpack.c.l.b16 %v458
      %v825 = vunpack.c.h.b16 %v458
      %v826 = vunpack.c.l.b16 %v459
      %v827 = vunpack.c.l.b16 %v460
      %v828 = vunpack.c.h.b16 %v460
      %v829 = vunpack.c.l.b16 %v461
      %v830 = vunpack.c.h.b16 %v461
      %v831 = vunpack.c.l.b16 %v462
      %v832 = vunpack.c.h.b16 %v462
      %v833 = vunpack.c.l.b16 %v463
      %v834 = vunpack.c.l.b16 %v464
      %v835 = vunpack.c.h.b16 %v464
      %v836 = vunpack.c.l.b16 %v465
      %v837 = vunpack.c.h.b16 %v465
      %v838 = vunpack.c.l.b16 %v466
      %v839 = vunpack.c.h.b16 %v466
      %v840 = vunpack.c.l.b16 %v467
      %v841 = vunpack.c.l.b16 %v468
      %v842 = vunpack.c.h.b16 %v468
      %v843 = vunpack.c.l.b16 %v469
      %v844 = vunpack.c.h.b16 %v469
      %v845 = vunpack.c.l.b16 %v470
      %v846 = vunpack.c.h.b16 %v470
      %v847 = vunpack.c.l.b16 %v471
      %v848 = vunpack.c.l.b16 %v472
      %v849 = vunpack.c.h.b16 %v472
      %v850 = vunpack.c.l.b16 %v473
      %v851 = vunpack.c.h.b16 %v473
      %v852 = vunpack.c.l.b16 %v474
      %v853 = vunpack.c.h.b16 %v474
      %v854 = vunpack.c.l.b16 %v475
      %v855 = vunpack.c.l.b16 %v476
      %v856 = vunpack.c.h.b16 %v476
      %v857 = vunpack.c.l.b16 %v477
      %v858 = vunpack.c.h.b16 %v477
      %v859 = vunpack.c.l.b16 %v478
      %v860 = vunpack.c.h.b16 %v478
      %v861 = vunpack.c.l.b16 %v479
      %v862 = vunpack.c.l.b16 %v480
      %v863 = vunpack.c.h.b16 %v480
      %v864 = vunpack.c.l.b16 %v481
      %v865 = vunpack.c.h.b16 %v481
      %v866 = vunpack.c.l.b16 %v482
      %v867 = vunpack.c.h.b16 %v482
      %v868 = vunpack.c.l.b16 %v483
      %v869 = vunpack.c.l.b16 %v484
      %v870 = vunpack.c.h.b16 %v484
      %v871 = vunpack.c.l.b16 %v485
      %v872 = vunpack.c.h.b16 %v485
      %v873 = vunpack.c.l.b16 %v486
      %v874 = vunpack.c.h.b16 %v486
      %v875 = vunpack.c.l.b16 %v487
      %v876 = vunpack.c.l.b16 %v488
      %v877 = vunpack.c.h.b16 %v488
      %v878 = vunpack.c.l.b16 %v489
      %v879 = vunpack.c.h.b16 %v489
      %v880 = vunpack.c.l.b16 %v490
      %v881 = vunpack.c.h.b16 %v490
      %v882 = vunpack.c.l.b16 %v491
      %v883 = vunpack.c.l.b16 %v492
      %v884 = vunpack.c.h.b16 %v492
      %v885 = vunpack.c.l.b16 %v493
      %v886 = vunpack.c.h.b16 %v493
      %v887 = vunpack.c.l.b16 %v494
      %v888 = vunpack.c.h.b16 %v494
      %v889 = vunpack.c.l.b16 %v495
      %v890 = vunpack.c.l.b16 %v496
      %v891 = vunpack.c.h.b16 %v496
      %v892 = vunpack.c.l.b16 %v497
      %v893 = vunpack.c.h.b16 %v497
      %v894 = vunpack.c.l.b16 %v498
      %v895 = vunpack.c.h.b16 %v498
      %v896 = vunpack.c.l.b16 %v499
      %v897 = vunpack.c.l.b16 %v500
      %v898 = vunpack.c.h.b16 %v500
      %v899 = vunpack.c.l.b16 %v501
      %v900 = vunpack.c.h.b16 %v501
      %v901 = vunpack.c.l.b16 %v502
      %v902 = vunpack.c.h.b16 %v502
      %v903 = vunpack.c.l.b16 %v503
      %v904 = vunpack.c.l.b16 %v504
      %v905 = vunpack.c.h.b16 %v504
      %v906 = vunpack.c.l.b16 %v505
      %v907 = vunpack.c.h.b16 %v505
      %v908 = vunpack.c.l.b16 %v506
      %v909 = vunpack.c.h.b16 %v506
      %v910 = vunpack.c.l.b16 %v507
      %v911 = vunpack.c.l.b16 %v508
      %v912 = vunpack.c.h.b16 %v508
      %v913 = vunpack.c.l.b16 %v509
      %v914 = vunpack.c.h.b16 %v509
      %v915 = vunpack.c.l.b16 %v510
      %v916 = vunpack.c.h.b16 %v510
      %v917 = vunpack.c.l.b16 %v511
      %v918 = vunpack.c.l.b16 %v512
      %v919 = vunpack.c.h.b16 %v512
      %v920 = vunpack.c.l.b16 %v513
      %v921 = vunpack.c.h.b16 %v513
      %v922 = vunpack.c.l.b16 %v514
      %v923 = vunpack.c.h.b16 %v514
      %v924 = vunpack.c.l.b16 %v515
      %v925 = vunpack.c.l.b16 %v516
      %v926 = vunpack.c.h.b16 %v516
      %v927 = vunpack.c.l.b16 %v517
      %v928 = vunpack.c.h.b16 %v517
      %v929 = vunpack.c.l.b16 %v518
      %v930 = vunpack.c.h.b16 %v518
      %v931 = vunpack.c.l.b16 %v519
      %v932 = vunpack.c.l.b16 %v520
      %v933 = vunpack.c.h.b16 %v520
      %v934 = vunpack.c.l.b16 %v521
      %v935 = vunpack.c.h.b16 %v521
      %v936 = vunpack.c.l.b16 %v522
      %v937 = vunpack.c.h.b16 %v522
      %v938 = vunpack.c.l.b16 %v523
      %v939 = vunpack.c.l.b16 %v524
      %v940 = vunpack.c.h.b16 %v524
      %v941 = vunpack.c.l.b16 %v525
      %v942 = vunpack.c.h.b16 %v525
      %v943 = vunpack.c.l.b16 %v526
      %v944 = vunpack.c.h.b16 %v526
      %v945 = vunpack.c.l.b16 %v527
      %v946 = vunpack.c.l.b16 %v528
      %v947 = vunpack.c.h.b16 %v528
      %v948 = vunpack.c.l.b16 %v529
      %v949 = vunpack.c.h.b16 %v529
      %v950 = vunpack.c.l.b16 %v530
      %v951 = vunpack.c.h.b16 %v530
      %v952 = vunpack.c.l.b16 %v531
      %v953 = vunpack.c.l.b16 %v532
      %v954 = vunpack.c.h.b16 %v532
      %v955 = vunpack.c.l.b16 %v533
      %v956 = vunpack.c.h.b16 %v533
      %v957 = vunpack.c.l.b16 %v534
      %v958 = vunpack.c.h.b16 %v534
      %v959 = vunpack.c.l.b16 %v535
      %v960 = vunpack.c.l.b16 %v536
      %v961 = vunpack.c.h.b16 %v536
      %v962 = vunpack.c.l.b16 %v537
      %v963 = vunpack.c.h.b16 %v537
      %v964 = vunpack.c.l.b16 %v538
      %v965 = vunpack.c.h.b16 %v538
      %v966 = vunpack.c.l.b16 %v539
      %v967 = vunpack.c.l.b16 %v540
      %v968 = vunpack.c.h.b16 %v540
      %v969 = vunpack.c.l.b16 %v541
      %v970 = vunpack.c.h.b16 %v541
      %v971 = vunpack.c.l.b16 %v542
      %v972 = vunpack.c.h.b16 %v542
      %v973 = vunpack.c.l.b16 %v543
      %v974 = vunpack.c.l.b16 %v544
      %v975 = vunpack.c.h.b16 %v544
      %v976 = vunpack.c.l.b16 %v545
      %v977 = vunpack.c.h.b16 %v545
      %v978 = vunpack.c.l.b16 %v546
      %v979 = vunpack.c.h.b16 %v546
      %v980 = vunpack.c.l.b16 %v547
      %v981 = vunpack.c.l.b16 %v548
      %v982 = vunpack.c.h.b16 %v548
      %v983 = vunpack.c.l.b16 %v549
      %v984 = vunpack.c.h.b16 %v549
      %v985 = vunpack.c.l.b16 %v550
      %v986 = vunpack.c.h.b16 %v550
      %v987 = vunpack.c.l.b16 %v551
      %v988 = vunpack.c.l.b16 %v552
      %v989 = vunpack.c.h.b16 %v552
      %v990 = vunpack.c.l.b16 %v553
      %v991 = vunpack.c.h.b16 %v553
      %v992 = vunpack.c.l.b16 %v554
      %v993 = vunpack.c.h.b16 %v554
      %v994 = vunpack.c.l.b16 %v555
      %v995 = vunpack.c.l.b16 %v556
      %v996 = vunpack.c.h.b16 %v556
      %v997 = vunpack.c.l.b16 %v557
      %v998 = vunpack.c.h.b16 %v557
      %v999 = vunpack.c.l.b16 %v558
      %v1000 = vunpack.c.h.b16 %v558
      %v1001 = vunpack.c.l.b16 %v559
      %v1002 = vunpack.c.l.b16 %v560
      %v1003 = vunpack.c.h.b16 %v560
      %v1004 = vunpack.c.l.b16 %v561
      %v1005 = vunpack.c.h.b16 %v561
      %v1006 = vunpack.c.l.b16 %v562
      %v1007 = vunpack.c.h.b16 %v562
      %v1008 = vunpack.c.l.b16 %v563
      %v1009 = vunpack.c.l.b16 %v564
      %v1010 = vunpack.c.h.b16 %v564
      %v1011 = vunpack.c.l.b16 %v565
      %v1012 = vunpack.c.h.b16 %v565
      %v1013 = vunpack.c.l.b16 %v566
      %v1014 = vunpack.c.h.b16 %v566
      %v1015 = vunpack.c.l.b16 %v567
      %v1016 = vunpack.c.l.b16 %v568
      %v1017 = vunpack.c.h.b16 %v568
      %v1018 = vunpack.c.l.b16 %v569
      %v1019 = vunpack.c.h.b16 %v569
      %v1020 = vunpack.c.l.b16 %v570
      %v1021 = vunpack.c.h.b16 %v570
      %v1022 = vunpack.c.l.b16 %v571
      %v1023 = vunpack.c.l.b16 %v572
      %v1024 = vunpack.c.h.b16 %v572
      %v1025 = vunpack.c.l.b16 %v573
      %v1026 = vunpack.c.h.b16 %v573
      %v1027 = vunpack.c.l.b16 %v574
      %v1028 = vunpack.c.h.b16 %v574
      %v1029 = vunpack.c.l.b16 %v575
      %v1030 = vpack.c.b16 %v813, %v806
      %v1031 = vpack.c.b16 %v814, %v807
      %v1032 = vpack.c.b16 %v815, %v808
      %v1033 = vpack.c.b16 %v816, %v809
      %v1034 = vpack.c.b16 %v817, %v810
      %v1035 = vpack.c.b16 %v818, %v811
      %v1036 = vpack.c.b16 %v819, %v812
      %v1037 = vpack.c.b16 %v827, %v820
      %v1038 = vpack.c.b16 %v828, %v821
      %v1039 = vpack.c.b16 %v829, %v822
      %v1040 = vpack.c.b16 %v830, %v823
      %v1041 = vpack.c.b16 %v831, %v824
      %v1042 = vpack.c.b16 %v832, %v825
      %v1043 = vpack.c.b16 %v833, %v826
      %v1044 = vpack.c.b16 %v841, %v834
      %v1045 = vpack.c.b16 %v842, %v835
      %v1046 = vpack.c.b16 %v843, %v836
      %v1047 = vpack.c.b16 %v844, %v837
      %v1048 = vpack.c.b16 %v845, %v838
      %v1049 = vpack.c.b16 %v846, %v839
      %v1050 = vpack.c.b16 %v847, %v840
      %v1051 = vpack.c.b16 %v855, %v848
      %v1052 = vpack.c.b16 %v856, %v849
      %v1053 = vpack.c.b16 %v857, %v850
      %v1054 = vpack.c.b16 %v858, %v851
      %v1055 = vpack.c.b16 %v859, %v852
      %v1056 = vpack.c.b16 %v860, %v853
      %v1057 = vpack.c.b16 %v861, %v854
      %v1058 = vpack.c.b16 %v869, %v862
      %v1059 = vpack.c.b16 %v870, %v863
      %v1060 = vpack.c.b16 %v871, %v864
      %v1061 = vpack.c.b16 %v872, %v865
      %v1062 = vpack.c.b16 %v873, %v866
      %v1063 = vpack.c.b16 %v874, %v867
      %v1064 = vpack.c.b16 %v875, %v868
      %v1065 = vpack.c.b16 %v883, %v876
      %v1066 = vpack.c.b16 %v884, %v877
      %v1067 = vpack.c.b16 %v885, %v878
      %v1068 = vpack.c.b16 %v886, %v879
      %v1069 = vpack.c.b16 %v887, %v880
      %v1070 = vpack.c.b16 %v888, %v881
      %v1071 = vpack.c.b16 %v889, %v882
      %v1072 = vpack.c.b16 %v897, %v890
      %v1073 = vpack.c.b16 %v898, %v891
      %v1074 = vpack.c.b16 %v899, %v892
      %v1075 = vpack.c.b16 %v900, %v893
      %v1076 = vpack.c.b16 %v901, %v894
      %v1077 = vpack.c.b16 %v902, %v895
      %v1078 = vpack.c.b16 %v903, %v896
      %v1079 = vpack.c.b16 %v911, %v904
      %v1080 = vpack.c.b16 %v912, %v905
      %v1081 = vpack.c.b16 %v913, %v906
      %v1082 = vpack.c.b16 %v914, %v907
      %v1083 = vpack.c.b16 %v915, %v908
      %v1084 = vpack.c.b16 %v916, %v909
      %v1085 = vpack.c.b16 %v917, %v910
      %v1086 = vpack.c.b16 %v925, %v918
      %v1087 = vpack.c.b16 %v926, %v919
      %v1088 = vpack.c.b16 %v927, %v920
      %v1089 = vpack.c.b16 %v928, %v921
      %v1090 = vpack.c.b16 %v929, %v922
      %v1091 = vpack.c.b16 %v930, %v923
      %v1092 = vpack.c.b16 %v931, %v924
      %v1093 = vpack.c.b16 %v939, %v932
      %v1094 = vpack.c.b16 %v940, %v933
      %v1095 = vpack.c.b16 %v941, %v934
      %v1096 = vpack.c.b16 %v942, %v935
      %v1097 = vpack.c.b16 %v943, %v936
      %v1098 = vpack.c.b16 %v944, %v937
      %v1099 = vpack.c.b16 %v945, %v938
      %v1100 = vpack.c.b16 %v953, %v946
      %v1101 = vpack.c.b16 %v954, %v947
      %v1102 = vpack.c.b16 %v955, %v948
      %v1103 = vpack.c.b16 %v956, %v949
      %v1104 = vpack.c.b16 %v957, %v950
      %v1105 = vpack.c.b16 %v958, %v951
      %v1106 = vpack.c.b16 %v959, %v952
      %v1107 = vpack.c.b16 %v967, %v960
      %v1108 = vpack.c.b16 %v968, %v961
      %v1109 = vpack.c.b16 %v969, %v962
      %v1110 = vpack.c.b16 %v970, %v963
      %v1111 = vpack.c.b16 %v971, %v964
      %v1112 = vpack.c.b16 %v972, %v965
      %v1113 = vpack.c.b16 %v973, %v966
      %v1114 = vpack.c.b16 %v981, %v974
      %v1115 = vpack.c.b16 %v982, %v975
      %v1116 = vpack.c.b16 %v983, %v976
      %v1117 = vpack.c.b16 %v984, %v977
      %v1118 = vpack.c.b16 %v985, %v978
      %v1119 = vpack.c.b16 %v986, %v979
      %v1120 = vpack.c.b16 %v987, %v980
      %v1121 = vpack.c.b16 %v995, %v988
      %v1122 = vpack.c.b16 %v996, %v989
      %v1123 = vpack.c.b16 %v997, %v990
      %v1124 = vpack.c.b16 %v998, %v991
      %v1125 = vpack.c.b16 %v999, %v992
      %v1126 = vpack.c.b16 %v1000, %v993
      %v1127 = vpack.c.b16 %v1001, %v994
      %v1128 = vpack.c.b16 %v1009, %v1002
      %v1129 = vpack.c.b16 %v1010, %v1003
      %v1130 = vpack.c.b16 %v1011, %v1004
      %v1131 = vpack.c.b16 %v1012, %v1005
      %v1132 = vpack.c.b16 %v1013, %v1006
      %v1133 = vpack.c.b16 %v1014, %v1007
      %v1134 = vpack.c.b16 %v1015, %v1008
      %v1135 = vpack.c.b16 %v1023, %v1016
      %v1136 = vpack.c.b16 %v1024, %v1017
      %v1137 = vpack.c.b16 %v1025, %v1018
      %v1138 = vpack.c.b16 %v1026, %v1019
      %v1139 = vpack.c.b16 %v1027, %v1020
      %v1140 = vpack.c.b16 %v1028, %v1021
      %v1141 = vpack.c.b16 %v1029, %v1022
      %v1336 = vunpack.c.l.b16 %v576
      %v1337 = vunpack.c.l.b16 %v577
      %v1338 = vunpack.c.l.b16 %v578
      %v1339 = vunpack.c.l.b16 %v579
      %v1340 = vunpack.c.l.b16 %v580
      %v1341 = vunpack.c.l.b16 %v581
      %v1342 = vunpack.c.l.b16 %v582
      %v1343 = vunpack.c.l.b16 %v583
      %v1344 = vunpack.c.l.b16 %v584
      %v1345 = vunpack.c.l.b16 %v585
      %v1346 = vunpack.c.l.b16 %v586
      %v1347 = vunpack.c.l.b16 %v587
      %v1348 = vunpack.c.l.b16 %v588
      %v1349 = vunpack.c.l.b16 %v589
      %v1350 = vunpack.c.l.b16 %v590
      %v1351 = vunpack.c.l.b16 %v591
      %v1352 = vunpack.c.l.b16 %v592
      %v1353 = vunpack.c.l.b16 %v593
      %v1354 = vunpack.c.l.b16 %v594
      %v1355 = vunpack.c.l.b16 %v595
      %v1356 = vunpack.c.l.b16 %v596
      %v1357 = vunpack.c.l.b16 %v597
      %v1358 = vunpack.c.l.b16 %v598
      %v1359 = vunpack.c.l.b16 %v599
      %v1360 = vunpack.c.l.b16 %v600
      %v1361 = vunpack.c.l.b16 %v601
      %v1362 = vunpack.c.l.b16 %v602
      %v1363 = vunpack.c.l.b16 %v603
      %v1364 = vunpack.c.l.b16 %v604
      %v1365 = vunpack.c.l.b16 %v605
      %v1366 = vunpack.c.l.b16 %v606
      %v1367 = vunpack.c.l.b16 %v607
      %v1368 = vunpack.c.l.b16 %v608
      %v1369 = vunpack.c.l.b16 %v609
      %v1370 = vunpack.c.l.b16 %v610
      %v1371 = vunpack.c.l.b16 %v611
      %v1372 = vunpack.c.l.b16 %v612
      %v1373 = vunpack.c.l.b16 %v613
      %v1374 = vunpack.c.l.b16 %v614
      %v1375 = vunpack.c.l.b16 %v615
      %v1376 = vunpack.c.l.b16 %v616
      %v1377 = vunpack.c.l.b16 %v617
      %v1378 = vunpack.c.l.b16 %v618
      %v1379 = vunpack.c.l.b16 %v619
      %v1380 = vunpack.c.l.b16 %v620
      %v1381 = vunpack.c.l.b16 %v621
      %v1382 = vunpack.c.l.b16 %v622
      %v1383 = vunpack.c.l.b16 %v623
      %v1384 = vunpack.c.l.b16 %v624
      %v1385 = vunpack.c.l.b16 %v625
      %v1386 = vunpack.c.l.b16 %v626
      %v1387 = vunpack.c.l.b16 %v627
      %v1388 = vunpack.c.l.b16 %v628
      %v1389 = vunpack.c.l.b16 %v629
      %v1390 = vunpack.c.l.b16 %v630
      %v1391 = vunpack.c.l.b16 %v631
      %v1392 = vunpack.c.l.b16 %v632
      %v1393 = vunpack.c.l.b16 %v633
      %v1394 = vunpack.c.l.b16 %v634
      %v1395 = vunpack.c.l.b16 %v635
      %v1396 = vunpack.c.l.b16 %v636
      %v1397 = vunpack.c.l.b16 %v637
      %v1398 = vunpack.c.l.b16 %v638
      %v1399 = vunpack.c.l.b16 %v639
      %v1400 = vunpack.c.l.b16 %v640
      %v1401 = vunpack.c.l.b16 %v641
      %v1402 = vunpack.c.l.b16 %v642
      %v1403 = vunpack.c.l.b16 %v643
      %v1404 = vunpack.c.l.b16 %v644
      %v1405 = vunpack.c.l.b16 %v645
      %v1406 = vunpack.c.l.b16 %v646
      %v1407 = vunpack.c.l.b16 %v647
      %v1408 = vunpack.c.l.b16 %v648
      %v1409 = vunpack.c.l.b16 %v649
      %v1410 = vunpack.c.l.b16 %v650
      %v1411 = vunpack.c.l.b16 %v651
      %v1412 = vunpack.c.l.b16 %v652
      %v1413 = vunpack.c.l.b16 %v653
      %v1414 = vunpack.c.l.b16 %v654
      %v1415 = vunpack.c.l.b16 %v655
      %v1416 = vunpack.c.l.b16 %v656
      %v1417 = vunpack.c.l.b16 %v657
      %v1418 = vunpack.c.l.b16 %v658
      %v1419 = vunpack.c.l.b16 %v659
      %v1420 = vunpack.c.l.b16 %v660
      %v1421 = vunpack.c.l.b16 %v661
      %v1422 = vunpack.c.l.b16 %v662
      %v1423 = vunpack.c.l.b16 %v663
      %v1424 = vunpack.c.l.b16 %v664
      %v1425 = vunpack.c.l.b16 %v665
      %v1426 = vunpack.c.l.b16 %v666
      %v1427 = vunpack.c.l.b16 %v667
      %v1428 = vunpack.c.l.b16 %v668
      %v1429 = vunpack.c.l.b16 %v669
      %v1430 = vunpack.c.l.b16 %v670
      %v1431 = vunpack.c.l.b16 %v671
      %v1432 = vunpack.c.l.b16 %v672
      %v1433 = vunpack.c.l.b16 %v673
      %v1434 = vpack.c.b16 %v1337, %v1336
      %v1435 = vpack.c.b16 %v1339, %v1338
      %v1436 = vpack.c.b16 %v1341, %v1340
      %v1437 = vpack.c.b16 %v1343, %v1342
      %v1438 = vpack.c.b16 %v1345, %v1344
      %v1439 = vpack.c.b16 %v1347, %v1346
      %v1440 = vpack.c.b16 %v1349, %v1348
      %v1441 = vpack.c.b16 %v1351, %v1350
      %v1442 = vpack.c.b16 %v1353, %v1352
      %v1443 = vpack.c.b16 %v1355, %v1354
      %v1444 = vpack.c.b16 %v1357, %v1356
      %v1445 = vpack.c.b16 %v1359, %v1358
      %v1446 = vpack.c.b16 %v1361, %v1360
      %v1447 = vpack.c.b16 %v1363, %v1362
      %v1448 = vpack.c.b16 %v1365, %v1364
      %v1449 = vpack.c.b16 %v1367, %v1366
      %v1450 = vpack.c.b16 %v1369, %v1368
      %v1451 = vpack.c.b16 %v1371, %v1370
      %v1452 = vpack.c.b16 %v1373, %v1372
      %v1453 = vpack.c.b16 %v1375, %v1374
      %v1454 = vpack.c.b16 %v1377, %v1376
      %v1455 = vpack.c.b16 %v1379, %v1378
      %v1456 = vpack.c.b16 %v1381, %v1380
      %v1457 = vpack.c.b16 %v1383, %v1382
      %v1458 = vpack.c.b16 %v1385, %v1384
      %v1459 = vpack.c.b16 %v1387, %v1386
      %v1460 = vpack.c.b16 %v1389, %v1388
      %v1461 = vpack.c.b16 %v1391, %v1390
      %v1462 = vpack.c.b16 %v1393, %v1392
      %v1463 = vpack.c.b16 %v1395, %v1394
      %v1464 = vpack.c.b16 %v1397, %v1396
      %v1465 = vpack.c.b16 %v1399, %v1398
      %v1466 = vpack.c.b16 %v1401, %v1400
      %v1467 = vpack.c.b16 %v1403, %v1402
      %v1468 = vpack.c.b16 %v1405, %v1404
      %v1469 = vpack.c.b16 %v1407, %v1406
      %v1470 = vpack.c.b16 %v1409, %v1408
      %v1471 = vpack.c.b16 %v1411, %v1410
      %v1472 = vpack.c.b16 %v1413, %v1412
      %v1473 = vpack.c.b16 %v1415, %v1414
      %v1474 = vpack.c.b16 %v1417, %v1416
      %v1475 = vpack.c.b16 %v1419, %v1418
      %v1476 = vpack.c.b16 %v1421, %v1420
      %v1477 = vpack.c.b16 %v1423, %v1422
      %v1478 = vpack.c.b16 %v1425, %v1424
      %v1479 = vpack.c.b16 %v1427, %v1426
      %v1480 = vpack.c.b16 %v1429, %v1428
      %v1481 = vpack.c.b16 %v1431, %v1430
      %v1482 = vpack.c.b16 %v1433, %v1432
      %vm1532 = vcmask 130048
      %v1534 = vsel %vm1532, %v1036, 0
      %v1537 = vsel %vm1532, %v1043, 0
      %v1540 = vsel %vm1532, %v1050, 0
      %v1543 = vsel %vm1532, %v1057, 0
      %v1546 = vsel %vm1532, %v1064, 0
      %v1549 = vsel %vm1532, %v1071, 0
      %v1552 = vsel %vm1532, %v1078, 0
      %v1555 = vsel %vm1532, %v1085, 0
      %v1558 = vsel %vm1532, %v1092, 0
      %v1561 = vsel %vm1532, %v1099, 0
      %v1564 = vsel %vm1532, %v1106, 0
      %v1567 = vsel %vm1532, %v1113, 0
      %v1570 = vsel %vm1532, %v1120, 0
      %v1573 = vsel %vm1532, %v1127, 0
      %v1576 = vsel %vm1532, %v1134, 0
      %v1579 = vsel %vm1532, %v1141, 0
      %1581 = vmatpush.bf16.msra.mxu0 %v1441
      %1582 = vmatpush.bf16.msra.mxu0 %v1440
      %1583 = vmatpush.bf16.msra.mxu0 %v1439
      %1584 = vmatpush.bf16.msra.mxu0 %v1438
      %1585 = vmatpush.bf16.msra.mxu0 %v1437
      %1586 = vmatpush.bf16.msra.mxu0 %v1436
      %1587 = vmatpush.bf16.msra.mxu0 %v1435
      %1588 = vmatpush.bf16.msra.mxu0 %v1434
      %1589 = vmatmul.bf16.gmra.mxu0 %v1030
      %v1590 = vpop.f32.mrf.mxu0
      %v1591 = vadd.f32 %v676, %v1590
      %v1592 = vpop.f32.mrf.mxu0
      %v1593 = vadd.f32 %v676, %v1592
      %1594 = vmatmul.bf16.gmra.mxu0 %v1037
      %v1595 = vpop.f32.mrf.mxu0
      %v1596 = vadd.f32 %v676, %v1595
      %v1597 = vpop.f32.mrf.mxu0
      %v1598 = vadd.f32 %v676, %v1597
      %1599 = vmatmul.bf16.gmra.mxu0 %v1044
      %v1600 = vpop.f32.mrf.mxu0
      %v1601 = vadd.f32 %v676, %v1600
      %v1602 = vpop.f32.mrf.mxu0
      %v1603 = vadd.f32 %v676, %v1602
      %1604 = vmatmul.bf16.gmra.mxu0 %v1051
      %v1605 = vpop.f32.mrf.mxu0
      %v1606 = vadd.f32 %v676, %v1605
      %v1607 = vpop.f32.mrf.mxu0
      %v1608 = vadd.f32 %v676, %v1607
      %1609 = vmatmul.bf16.gmra.mxu0 %v1058
      %v1610 = vpop.f32.mrf.mxu0
      %v1611 = vadd.f32 %v676, %v1610
      %v1612 = vpop.f32.mrf.mxu0
      %v1613 = vadd.f32 %v676, %v1612
      %1614 = vmatmul.bf16.gmra.mxu0 %v1065
      %v1615 = vpop.f32.mrf.mxu0
      %v1616 = vadd.f32 %v676, %v1615
      %v1617 = vpop.f32.mrf.mxu0
      %v1618 = vadd.f32 %v676, %v1617
      %1619 = vmatmul.bf16.gmra.mxu0 %v1072
      %v1620 = vpop.f32.mrf.mxu0
      %v1621 = vadd.f32 %v676, %v1620
      %v1622 = vpop.f32.mrf.mxu0
      %v1623 = vadd.f32 %v676, %v1622
      %1624 = vmatmul.bf16.gmra.mxu0 %v1079
      %v1625 = vpop.f32.mrf.mxu0
      %v1626 = vadd.f32 %v676, %v1625
      %v1627 = vpop.f32.mrf.mxu0
      %v1628 = vadd.f32 %v676, %v1627
      %1629 = vmatmul.bf16.gmra.mxu0 %v1086
      %v1630 = vpop.f32.mrf.mxu0
      %v1631 = vadd.f32 %v676, %v1630
      %v1632 = vpop.f32.mrf.mxu0
      %v1633 = vadd.f32 %v676, %v1632
      %1634 = vmatmul.bf16.gmra.mxu0 %v1093
      %v1635 = vpop.f32.mrf.mxu0
      %v1636 = vadd.f32 %v676, %v1635
      %v1637 = vpop.f32.mrf.mxu0
      %v1638 = vadd.f32 %v676, %v1637
      %1639 = vmatmul.bf16.gmra.mxu0 %v1100
      %v1640 = vpop.f32.mrf.mxu0
      %v1641 = vadd.f32 %v676, %v1640
      %v1642 = vpop.f32.mrf.mxu0
      %v1643 = vadd.f32 %v676, %v1642
      %1644 = vmatmul.bf16.gmra.mxu0 %v1107
      %v1645 = vpop.f32.mrf.mxu0
      %v1646 = vadd.f32 %v676, %v1645
      %v1647 = vpop.f32.mrf.mxu0
      %v1648 = vadd.f32 %v676, %v1647
      %1649 = vmatmul.bf16.gmra.mxu0 %v1114
      %v1650 = vpop.f32.mrf.mxu0
      %v1651 = vadd.f32 %v676, %v1650
      %v1652 = vpop.f32.mrf.mxu0
      %v1653 = vadd.f32 %v676, %v1652
      %1654 = vmatmul.bf16.gmra.mxu0 %v1121
      %v1655 = vpop.f32.mrf.mxu0
      %v1656 = vadd.f32 %v676, %v1655
      %v1657 = vpop.f32.mrf.mxu0
      %v1658 = vadd.f32 %v676, %v1657
      %1659 = vmatmul.bf16.gmra.mxu0 %v1128
      %v1660 = vpop.f32.mrf.mxu0
      %v1661 = vadd.f32 %v676, %v1660
      %v1662 = vpop.f32.mrf.mxu0
      %v1663 = vadd.f32 %v676, %v1662
      %1664 = vmatmul.bf16.gmra.mxu0 %v1135
      %v1665 = vpop.f32.mrf.mxu0
      %v1666 = vadd.f32 %v676, %v1665
      %v1667 = vpop.f32.mrf.mxu0
      %v1668 = vadd.f32 %v676, %v1667
      %1669 = vdwg.mxu0
      %1670 = vmatpush.bf16.msra.mxu0 %v1449
      %1671 = vmatpush.bf16.msra.mxu0 %v1448
      %1672 = vmatpush.bf16.msra.mxu0 %v1447
      %1673 = vmatpush.bf16.msra.mxu0 %v1446
      %1674 = vmatpush.bf16.msra.mxu0 %v1445
      %1675 = vmatpush.bf16.msra.mxu0 %v1444
      %1676 = vmatpush.bf16.msra.mxu0 %v1443
      %1677 = vmatpush.bf16.msra.mxu0 %v1442
      %1678 = vmatmul.bf16.gmra.mxu0 %v1031
      %v1679 = vpop.f32.mrf.mxu0
      %v1680 = vadd.f32 %v1591, %v1679
      %v1681 = vpop.f32.mrf.mxu0
      %v1682 = vadd.f32 %v1593, %v1681
      %1683 = vmatmul.bf16.gmra.mxu0 %v1038
      %v1684 = vpop.f32.mrf.mxu0
      %v1685 = vadd.f32 %v1596, %v1684
      %v1686 = vpop.f32.mrf.mxu0
      %v1687 = vadd.f32 %v1598, %v1686
      %1688 = vmatmul.bf16.gmra.mxu0 %v1045
      %v1689 = vpop.f32.mrf.mxu0
      %v1690 = vadd.f32 %v1601, %v1689
      %v1691 = vpop.f32.mrf.mxu0
      %v1692 = vadd.f32 %v1603, %v1691
      %1693 = vmatmul.bf16.gmra.mxu0 %v1052
      %v1694 = vpop.f32.mrf.mxu0
      %v1695 = vadd.f32 %v1606, %v1694
      %v1696 = vpop.f32.mrf.mxu0
      %v1697 = vadd.f32 %v1608, %v1696
      %1698 = vmatmul.bf16.gmra.mxu0 %v1059
      %v1699 = vpop.f32.mrf.mxu0
      %v1700 = vadd.f32 %v1611, %v1699
      %v1701 = vpop.f32.mrf.mxu0
      %v1702 = vadd.f32 %v1613, %v1701
      %1703 = vmatmul.bf16.gmra.mxu0 %v1066
      %v1704 = vpop.f32.mrf.mxu0
      %v1705 = vadd.f32 %v1616, %v1704
      %v1706 = vpop.f32.mrf.mxu0
      %v1707 = vadd.f32 %v1618, %v1706
      %1708 = vmatmul.bf16.gmra.mxu0 %v1073
      %v1709 = vpop.f32.mrf.mxu0
      %v1710 = vadd.f32 %v1621, %v1709
      %v1711 = vpop.f32.mrf.mxu0
      %v1712 = vadd.f32 %v1623, %v1711
      %1713 = vmatmul.bf16.gmra.mxu0 %v1080
      %v1714 = vpop.f32.mrf.mxu0
      %v1715 = vadd.f32 %v1626, %v1714
      %v1716 = vpop.f32.mrf.mxu0
      %v1717 = vadd.f32 %v1628, %v1716
      %1718 = vmatmul.bf16.gmra.mxu0 %v1087
      %v1719 = vpop.f32.mrf.mxu0
      %v1720 = vadd.f32 %v1631, %v1719
      %v1721 = vpop.f32.mrf.mxu0
      %v1722 = vadd.f32 %v1633, %v1721
      %1723 = vmatmul.bf16.gmra.mxu0 %v1094
      %v1724 = vpop.f32.mrf.mxu0
      %v1725 = vadd.f32 %v1636, %v1724
      %v1726 = vpop.f32.mrf.mxu0
      %v1727 = vadd.f32 %v1638, %v1726
      %1728 = vmatmul.bf16.gmra.mxu0 %v1101
      %v1729 = vpop.f32.mrf.mxu0
      %v1730 = vadd.f32 %v1641, %v1729
      %v1731 = vpop.f32.mrf.mxu0
      %v1732 = vadd.f32 %v1643, %v1731
      %1733 = vmatmul.bf16.gmra.mxu0 %v1108
      %v1734 = vpop.f32.mrf.mxu0
      %v1735 = vadd.f32 %v1646, %v1734
      %v1736 = vpop.f32.mrf.mxu0
      %v1737 = vadd.f32 %v1648, %v1736
      %1738 = vmatmul.bf16.gmra.mxu0 %v1115
      %v1739 = vpop.f32.mrf.mxu0
      %v1740 = vadd.f32 %v1651, %v1739
      %v1741 = vpop.f32.mrf.mxu0
      %v1742 = vadd.f32 %v1653, %v1741
      %1743 = vmatmul.bf16.gmra.mxu0 %v1122
      %v1744 = vpop.f32.mrf.mxu0
      %v1745 = vadd.f32 %v1656, %v1744
      %v1746 = vpop.f32.mrf.mxu0
      %v1747 = vadd.f32 %v1658, %v1746
      %1748 = vmatmul.bf16.gmra.mxu0 %v1129
      %v1749 = vpop.f32.mrf.mxu0
      %v1750 = vadd.f32 %v1661, %v1749
      %v1751 = vpop.f32.mrf.mxu0
      %v1752 = vadd.f32 %v1663, %v1751
      %1753 = vmatmul.bf16.gmra.mxu0 %v1136
      %v1754 = vpop.f32.mrf.mxu0
      %v1755 = vadd.f32 %v1666, %v1754
      %v1756 = vpop.f32.mrf.mxu0
      %v1757 = vadd.f32 %v1668, %v1756
      %1758 = vdwg.mxu0
      %1759 = vmatpush.bf16.msra.mxu0 %v1457
      %1760 = vmatpush.bf16.msra.mxu0 %v1456
      %1761 = vmatpush.bf16.msra.mxu0 %v1455
      %1762 = vmatpush.bf16.msra.mxu0 %v1454
      %1763 = vmatpush.bf16.msra.mxu0 %v1453
      %1764 = vmatpush.bf16.msra.mxu0 %v1452
      %1765 = vmatpush.bf16.msra.mxu0 %v1451
      %1766 = vmatpush.bf16.msra.mxu0 %v1450
      %1767 = vmatmul.bf16.gmra.mxu0 %v1032
      %v1768 = vpop.f32.mrf.mxu0
      %v1769 = vadd.f32 %v1680, %v1768
      %v1770 = vpop.f32.mrf.mxu0
      %v1771 = vadd.f32 %v1682, %v1770
      %1772 = vmatmul.bf16.gmra.mxu0 %v1039
      %v1773 = vpop.f32.mrf.mxu0
      %v1774 = vadd.f32 %v1685, %v1773
      %v1775 = vpop.f32.mrf.mxu0
      %v1776 = vadd.f32 %v1687, %v1775
      %1777 = vmatmul.bf16.gmra.mxu0 %v1046
      %v1778 = vpop.f32.mrf.mxu0
      %v1779 = vadd.f32 %v1690, %v1778
      %v1780 = vpop.f32.mrf.mxu0
      %v1781 = vadd.f32 %v1692, %v1780
      %1782 = vmatmul.bf16.gmra.mxu0 %v1053
      %v1783 = vpop.f32.mrf.mxu0
      %v1784 = vadd.f32 %v1695, %v1783
      %v1785 = vpop.f32.mrf.mxu0
      %v1786 = vadd.f32 %v1697, %v1785
      %1787 = vmatmul.bf16.gmra.mxu0 %v1060
      %v1788 = vpop.f32.mrf.mxu0
      %v1789 = vadd.f32 %v1700, %v1788
      %v1790 = vpop.f32.mrf.mxu0
      %v1791 = vadd.f32 %v1702, %v1790
      %1792 = vmatmul.bf16.gmra.mxu0 %v1067
      %v1793 = vpop.f32.mrf.mxu0
      %v1794 = vadd.f32 %v1705, %v1793
      %v1795 = vpop.f32.mrf.mxu0
      %v1796 = vadd.f32 %v1707, %v1795
      %1797 = vmatmul.bf16.gmra.mxu0 %v1074
      %v1798 = vpop.f32.mrf.mxu0
      %v1799 = vadd.f32 %v1710, %v1798
      %v1800 = vpop.f32.mrf.mxu0
      %v1801 = vadd.f32 %v1712, %v1800
      %1802 = vmatmul.bf16.gmra.mxu0 %v1081
      %v1803 = vpop.f32.mrf.mxu0
      %v1804 = vadd.f32 %v1715, %v1803
      %v1805 = vpop.f32.mrf.mxu0
      %v1806 = vadd.f32 %v1717, %v1805
      %1807 = vmatmul.bf16.gmra.mxu0 %v1088
      %v1808 = vpop.f32.mrf.mxu0
      %v1809 = vadd.f32 %v1720, %v1808
      %v1810 = vpop.f32.mrf.mxu0
      %v1811 = vadd.f32 %v1722, %v1810
      %1812 = vmatmul.bf16.gmra.mxu0 %v1095
      %v1813 = vpop.f32.mrf.mxu0
      %v1814 = vadd.f32 %v1725, %v1813
      %v1815 = vpop.f32.mrf.mxu0
      %v1816 = vadd.f32 %v1727, %v1815
      %1817 = vmatmul.bf16.gmra.mxu0 %v1102
      %v1818 = vpop.f32.mrf.mxu0
      %v1819 = vadd.f32 %v1730, %v1818
      %v1820 = vpop.f32.mrf.mxu0
      %v1821 = vadd.f32 %v1732, %v1820
      %1822 = vmatmul.bf16.gmra.mxu0 %v1109
      %v1823 = vpop.f32.mrf.mxu0
      %v1824 = vadd.f32 %v1735, %v1823
      %v1825 = vpop.f32.mrf.mxu0
      %v1826 = vadd.f32 %v1737, %v1825
      %1827 = vmatmul.bf16.gmra.mxu0 %v1116
      %v1828 = vpop.f32.mrf.mxu0
      %v1829 = vadd.f32 %v1740, %v1828
      %v1830 = vpop.f32.mrf.mxu0
      %v1831 = vadd.f32 %v1742, %v1830
      %1832 = vmatmul.bf16.gmra.mxu0 %v1123
      %v1833 = vpop.f32.mrf.mxu0
      %v1834 = vadd.f32 %v1745, %v1833
      %v1835 = vpop.f32.mrf.mxu0
      %v1836 = vadd.f32 %v1747, %v1835
      %1837 = vmatmul.bf16.gmra.mxu0 %v1130
      %v1838 = vpop.f32.mrf.mxu0
      %v1839 = vadd.f32 %v1750, %v1838
      %v1840 = vpop.f32.mrf.mxu0
      %v1841 = vadd.f32 %v1752, %v1840
      %1842 = vmatmul.bf16.gmra.mxu0 %v1137
      %v1843 = vpop.f32.mrf.mxu0
      %v1844 = vadd.f32 %v1755, %v1843
      %v1845 = vpop.f32.mrf.mxu0
      %v1846 = vadd.f32 %v1757, %v1845
      %1847 = vdwg.mxu0
      %1848 = vmatpush.bf16.msra.mxu0 %v1465
      %1849 = vmatpush.bf16.msra.mxu0 %v1464
      %1850 = vmatpush.bf16.msra.mxu0 %v1463
      %1851 = vmatpush.bf16.msra.mxu0 %v1462
      %1852 = vmatpush.bf16.msra.mxu0 %v1461
      %1853 = vmatpush.bf16.msra.mxu0 %v1460
      %1854 = vmatpush.bf16.msra.mxu0 %v1459
      %1855 = vmatpush.bf16.msra.mxu0 %v1458
      %1856 = vmatmul.bf16.gmra.mxu0 %v1033
      %v1857 = vpop.f32.mrf.mxu0
      %v1858 = vadd.f32 %v1769, %v1857
      %v1859 = vpop.f32.mrf.mxu0
      %v1860 = vadd.f32 %v1771, %v1859
      %1861 = vmatmul.bf16.gmra.mxu0 %v1040
      %v1862 = vpop.f32.mrf.mxu0
      %v1863 = vadd.f32 %v1774, %v1862
      %v1864 = vpop.f32.mrf.mxu0
      %v1865 = vadd.f32 %v1776, %v1864
      %1866 = vmatmul.bf16.gmra.mxu0 %v1047
      %v1867 = vpop.f32.mrf.mxu0
      %v1868 = vadd.f32 %v1779, %v1867
      %v1869 = vpop.f32.mrf.mxu0
      %v1870 = vadd.f32 %v1781, %v1869
      %1871 = vmatmul.bf16.gmra.mxu0 %v1054
      %v1872 = vpop.f32.mrf.mxu0
      %v1873 = vadd.f32 %v1784, %v1872
      %v1874 = vpop.f32.mrf.mxu0
      %v1875 = vadd.f32 %v1786, %v1874
      %1876 = vmatmul.bf16.gmra.mxu0 %v1061
      %v1877 = vpop.f32.mrf.mxu0
      %v1878 = vadd.f32 %v1789, %v1877
      %v1879 = vpop.f32.mrf.mxu0
      %v1880 = vadd.f32 %v1791, %v1879
      %1881 = vmatmul.bf16.gmra.mxu0 %v1068
      %v1882 = vpop.f32.mrf.mxu0
      %v1883 = vadd.f32 %v1794, %v1882
      %v1884 = vpop.f32.mrf.mxu0
      %v1885 = vadd.f32 %v1796, %v1884
      %1886 = vmatmul.bf16.gmra.mxu0 %v1075
      %v1887 = vpop.f32.mrf.mxu0
      %v1888 = vadd.f32 %v1799, %v1887
      %v1889 = vpop.f32.mrf.mxu0
      %v1890 = vadd.f32 %v1801, %v1889
      %1891 = vmatmul.bf16.gmra.mxu0 %v1082
      %v1892 = vpop.f32.mrf.mxu0
      %v1893 = vadd.f32 %v1804, %v1892
      %v1894 = vpop.f32.mrf.mxu0
      %v1895 = vadd.f32 %v1806, %v1894
      %1896 = vmatmul.bf16.gmra.mxu0 %v1089
      %v1897 = vpop.f32.mrf.mxu0
      %v1898 = vadd.f32 %v1809, %v1897
      %v1899 = vpop.f32.mrf.mxu0
      %v1900 = vadd.f32 %v1811, %v1899
      %1901 = vmatmul.bf16.gmra.mxu0 %v1096
      %v1902 = vpop.f32.mrf.mxu0
      %v1903 = vadd.f32 %v1814, %v1902
      %v1904 = vpop.f32.mrf.mxu0
      %v1905 = vadd.f32 %v1816, %v1904
      %1906 = vmatmul.bf16.gmra.mxu0 %v1103
      %v1907 = vpop.f32.mrf.mxu0
      %v1908 = vadd.f32 %v1819, %v1907
      %v1909 = vpop.f32.mrf.mxu0
      %v1910 = vadd.f32 %v1821, %v1909
      %1911 = vmatmul.bf16.gmra.mxu0 %v1110
      %v1912 = vpop.f32.mrf.mxu0
      %v1913 = vadd.f32 %v1824, %v1912
      %v1914 = vpop.f32.mrf.mxu0
      %v1915 = vadd.f32 %v1826, %v1914
      %1916 = vmatmul.bf16.gmra.mxu0 %v1117
      %v1917 = vpop.f32.mrf.mxu0
      %v1918 = vadd.f32 %v1829, %v1917
      %v1919 = vpop.f32.mrf.mxu0
      %v1920 = vadd.f32 %v1831, %v1919
      %1921 = vmatmul.bf16.gmra.mxu0 %v1124
      %v1922 = vpop.f32.mrf.mxu0
      %v1923 = vadd.f32 %v1834, %v1922
      %v1924 = vpop.f32.mrf.mxu0
      %v1925 = vadd.f32 %v1836, %v1924
      %1926 = vmatmul.bf16.gmra.mxu0 %v1131
      %v1927 = vpop.f32.mrf.mxu0
      %v1928 = vadd.f32 %v1839, %v1927
      %v1929 = vpop.f32.mrf.mxu0
      %v1930 = vadd.f32 %v1841, %v1929
      %1931 = vmatmul.bf16.gmra.mxu0 %v1138
      %v1932 = vpop.f32.mrf.mxu0
      %v1933 = vadd.f32 %v1844, %v1932
      %v1934 = vpop.f32.mrf.mxu0
      %v1935 = vadd.f32 %v1846, %v1934
      %1936 = vdwg.mxu0
      %1937 = vmatpush.bf16.msra.mxu0 %v1473
      %1938 = vmatpush.bf16.msra.mxu0 %v1472
      %1939 = vmatpush.bf16.msra.mxu0 %v1471
      %1940 = vmatpush.bf16.msra.mxu0 %v1470
      %1941 = vmatpush.bf16.msra.mxu0 %v1469
      %1942 = vmatpush.bf16.msra.mxu0 %v1468
      %1943 = vmatpush.bf16.msra.mxu0 %v1467
      %1944 = vmatpush.bf16.msra.mxu0 %v1466
      %1945 = vmatmul.bf16.gmra.mxu0 %v1034
      %v1946 = vpop.f32.mrf.mxu0
      %v1947 = vadd.f32 %v1858, %v1946
      %v1948 = vpop.f32.mrf.mxu0
      %v1949 = vadd.f32 %v1860, %v1948
      %1950 = vmatmul.bf16.gmra.mxu0 %v1041
      %v1951 = vpop.f32.mrf.mxu0
      %v1952 = vadd.f32 %v1863, %v1951
      %v1953 = vpop.f32.mrf.mxu0
      %v1954 = vadd.f32 %v1865, %v1953
      %1955 = vmatmul.bf16.gmra.mxu0 %v1048
      %v1956 = vpop.f32.mrf.mxu0
      %v1957 = vadd.f32 %v1868, %v1956
      %v1958 = vpop.f32.mrf.mxu0
      %v1959 = vadd.f32 %v1870, %v1958
      %1960 = vmatmul.bf16.gmra.mxu0 %v1055
      %v1961 = vpop.f32.mrf.mxu0
      %v1962 = vadd.f32 %v1873, %v1961
      %v1963 = vpop.f32.mrf.mxu0
      %v1964 = vadd.f32 %v1875, %v1963
      %1965 = vmatmul.bf16.gmra.mxu0 %v1062
      %v1966 = vpop.f32.mrf.mxu0
      %v1967 = vadd.f32 %v1878, %v1966
      %v1968 = vpop.f32.mrf.mxu0
      %v1969 = vadd.f32 %v1880, %v1968
      %1970 = vmatmul.bf16.gmra.mxu0 %v1069
      %v1971 = vpop.f32.mrf.mxu0
      %v1972 = vadd.f32 %v1883, %v1971
      %v1973 = vpop.f32.mrf.mxu0
      %v1974 = vadd.f32 %v1885, %v1973
      %1975 = vmatmul.bf16.gmra.mxu0 %v1076
      %v1976 = vpop.f32.mrf.mxu0
      %v1977 = vadd.f32 %v1888, %v1976
      %v1978 = vpop.f32.mrf.mxu0
      %v1979 = vadd.f32 %v1890, %v1978
      %1980 = vmatmul.bf16.gmra.mxu0 %v1083
      %v1981 = vpop.f32.mrf.mxu0
      %v1982 = vadd.f32 %v1893, %v1981
      %v1983 = vpop.f32.mrf.mxu0
      %v1984 = vadd.f32 %v1895, %v1983
      %1985 = vmatmul.bf16.gmra.mxu0 %v1090
      %v1986 = vpop.f32.mrf.mxu0
      %v1987 = vadd.f32 %v1898, %v1986
      %v1988 = vpop.f32.mrf.mxu0
      %v1989 = vadd.f32 %v1900, %v1988
      %1990 = vmatmul.bf16.gmra.mxu0 %v1097
      %v1991 = vpop.f32.mrf.mxu0
      %v1992 = vadd.f32 %v1903, %v1991
      %v1993 = vpop.f32.mrf.mxu0
      %v1994 = vadd.f32 %v1905, %v1993
      %1995 = vmatmul.bf16.gmra.mxu0 %v1104
      %v1996 = vpop.f32.mrf.mxu0
      %v1997 = vadd.f32 %v1908, %v1996
      %v1998 = vpop.f32.mrf.mxu0
      %v1999 = vadd.f32 %v1910, %v1998
      %2000 = vmatmul.bf16.gmra.mxu0 %v1111
      %v2001 = vpop.f32.mrf.mxu0
      %v2002 = vadd.f32 %v1913, %v2001
      %v2003 = vpop.f32.mrf.mxu0
      %v2004 = vadd.f32 %v1915, %v2003
      %2005 = vmatmul.bf16.gmra.mxu0 %v1118
      %v2006 = vpop.f32.mrf.mxu0
      %v2007 = vadd.f32 %v1918, %v2006
      %v2008 = vpop.f32.mrf.mxu0
      %v2009 = vadd.f32 %v1920, %v2008
      %2010 = vmatmul.bf16.gmra.mxu0 %v1125
      %v2011 = vpop.f32.mrf.mxu0
      %v2012 = vadd.f32 %v1923, %v2011
      %v2013 = vpop.f32.mrf.mxu0
      %v2014 = vadd.f32 %v1925, %v2013
      %2015 = vmatmul.bf16.gmra.mxu0 %v1132
      %v2016 = vpop.f32.mrf.mxu0
      %v2017 = vadd.f32 %v1928, %v2016
      %v2018 = vpop.f32.mrf.mxu0
      %v2019 = vadd.f32 %v1930, %v2018
      %2020 = vmatmul.bf16.gmra.mxu0 %v1139
      %v2021 = vpop.f32.mrf.mxu0
      %v2022 = vadd.f32 %v1933, %v2021
      %v2023 = vpop.f32.mrf.mxu0
      %v2024 = vadd.f32 %v1935, %v2023
      %2025 = vdwg.mxu0
      %2026 = vmatpush.bf16.msra.mxu0 %v1481
      %2027 = vmatpush.bf16.msra.mxu0 %v1480
      %2028 = vmatpush.bf16.msra.mxu0 %v1479
      %2029 = vmatpush.bf16.msra.mxu0 %v1478
      %2030 = vmatpush.bf16.msra.mxu0 %v1477
      %2031 = vmatpush.bf16.msra.mxu0 %v1476
      %2032 = vmatpush.bf16.msra.mxu0 %v1475
      %2033 = vmatpush.bf16.msra.mxu0 %v1474
      %2034 = vmatmul.bf16.gmra.mxu0 %v1035
      %v2035 = vpop.f32.mrf.mxu0
      %v2036 = vadd.f32 %v1947, %v2035
      %v2037 = vpop.f32.mrf.mxu0
      %v2038 = vadd.f32 %v1949, %v2037
      %2039 = vmatmul.bf16.gmra.mxu0 %v1042
      %v2040 = vpop.f32.mrf.mxu0
      %v2041 = vadd.f32 %v1952, %v2040
      %v2042 = vpop.f32.mrf.mxu0
      %v2043 = vadd.f32 %v1954, %v2042
      %2044 = vmatmul.bf16.gmra.mxu0 %v1049
      %v2045 = vpop.f32.mrf.mxu0
      %v2046 = vadd.f32 %v1957, %v2045
      %v2047 = vpop.f32.mrf.mxu0
      %v2048 = vadd.f32 %v1959, %v2047
      %2049 = vmatmul.bf16.gmra.mxu0 %v1056
      %v2050 = vpop.f32.mrf.mxu0
      %v2051 = vadd.f32 %v1962, %v2050
      %v2052 = vpop.f32.mrf.mxu0
      %v2053 = vadd.f32 %v1964, %v2052
      %2054 = vmatmul.bf16.gmra.mxu0 %v1063
      %v2055 = vpop.f32.mrf.mxu0
      %v2056 = vadd.f32 %v1967, %v2055
      %v2057 = vpop.f32.mrf.mxu0
      %v2058 = vadd.f32 %v1969, %v2057
      %2059 = vmatmul.bf16.gmra.mxu0 %v1070
      %v2060 = vpop.f32.mrf.mxu0
      %v2061 = vadd.f32 %v1972, %v2060
      %v2062 = vpop.f32.mrf.mxu0
      %v2063 = vadd.f32 %v1974, %v2062
      %2064 = vmatmul.bf16.gmra.mxu0 %v1077
      %v2065 = vpop.f32.mrf.mxu0
      %v2066 = vadd.f32 %v1977, %v2065
      %v2067 = vpop.f32.mrf.mxu0
      %v2068 = vadd.f32 %v1979, %v2067
      %2069 = vmatmul.bf16.gmra.mxu0 %v1084
      %v2070 = vpop.f32.mrf.mxu0
      %v2071 = vadd.f32 %v1982, %v2070
      %v2072 = vpop.f32.mrf.mxu0
      %v2073 = vadd.f32 %v1984, %v2072
      %2074 = vmatmul.bf16.gmra.mxu0 %v1091
      %v2075 = vpop.f32.mrf.mxu0
      %v2076 = vadd.f32 %v1987, %v2075
      %v2077 = vpop.f32.mrf.mxu0
      %v2078 = vadd.f32 %v1989, %v2077
      %2079 = vmatmul.bf16.gmra.mxu0 %v1098
      %v2080 = vpop.f32.mrf.mxu0
      %v2081 = vadd.f32 %v1992, %v2080
      %v2082 = vpop.f32.mrf.mxu0
      %v2083 = vadd.f32 %v1994, %v2082
      %2084 = vmatmul.bf16.gmra.mxu0 %v1105
      %v2085 = vpop.f32.mrf.mxu0
      %v2086 = vadd.f32 %v1997, %v2085
      %v2087 = vpop.f32.mrf.mxu0
      %v2088 = vadd.f32 %v1999, %v2087
      %2089 = vmatmul.bf16.gmra.mxu0 %v1112
      %v2090 = vpop.f32.mrf.mxu0
      %v2091 = vadd.f32 %v2002, %v2090
      %v2092 = vpop.f32.mrf.mxu0
      %v2093 = vadd.f32 %v2004, %v2092
      %2094 = vmatmul.bf16.gmra.mxu0 %v1119
      %v2095 = vpop.f32.mrf.mxu0
      %v2096 = vadd.f32 %v2007, %v2095
      %v2097 = vpop.f32.mrf.mxu0
      %v2098 = vadd.f32 %v2009, %v2097
      %2099 = vmatmul.bf16.gmra.mxu0 %v1126
      %v2100 = vpop.f32.mrf.mxu0
      %v2101 = vadd.f32 %v2012, %v2100
      %v2102 = vpop.f32.mrf.mxu0
      %v2103 = vadd.f32 %v2014, %v2102
      %2104 = vmatmul.bf16.gmra.mxu0 %v1133
      %v2105 = vpop.f32.mrf.mxu0
      %v2106 = vadd.f32 %v2017, %v2105
      %v2107 = vpop.f32.mrf.mxu0
      %v2108 = vadd.f32 %v2019, %v2107
      %2109 = vmatmul.bf16.gmra.mxu0 %v1140
      %v2110 = vpop.f32.mrf.mxu0
      %v2111 = vadd.f32 %v2022, %v2110
      %v2112 = vpop.f32.mrf.mxu0
      %v2113 = vadd.f32 %v2024, %v2112
      %2114 = vdwg.mxu0
      %2115 = vmatpush.bf16.msra.mxu0 0
      %2116 = vmatpush.bf16.msra.mxu0 0
      %2117 = vmatpush.bf16.msra.mxu0 0
      %2118 = vmatpush.bf16.msra.mxu0 0
      %2119 = vmatpush.bf16.msra.mxu0 0
      %2120 = vmatpush.bf16.msra.mxu0 0
      %2121 = vmatpush.bf16.msra.mxu0 0
      %2122 = vmatpush.bf16.msra.mxu0 %v1482
      %2123 = vmatmul.bf16.gmra.mxu0 %v1534
      %v2124 = vpop.f32.mrf.mxu0
      %v2125 = vadd.f32 %v2036, %v2124
      %v2126 = vpop.f32.mrf.mxu0
      %v2127 = vadd.f32 %v2038, %v2126
      %2128 = vmatmul.bf16.gmra.mxu0 %v1537
      %v2129 = vpop.f32.mrf.mxu0
      %v2130 = vadd.f32 %v2041, %v2129
      %v2131 = vpop.f32.mrf.mxu0
      %v2132 = vadd.f32 %v2043, %v2131
      %2133 = vmatmul.bf16.gmra.mxu0 %v1540
      %v2134 = vpop.f32.mrf.mxu0
      %v2135 = vadd.f32 %v2046, %v2134
      %v2136 = vpop.f32.mrf.mxu0
      %v2137 = vadd.f32 %v2048, %v2136
      %2138 = vmatmul.bf16.gmra.mxu0 %v1543
      %v2139 = vpop.f32.mrf.mxu0
      %v2140 = vadd.f32 %v2051, %v2139
      %v2141 = vpop.f32.mrf.mxu0
      %v2142 = vadd.f32 %v2053, %v2141
      %2143 = vmatmul.bf16.gmra.mxu0 %v1546
      %v2144 = vpop.f32.mrf.mxu0
      %v2145 = vadd.f32 %v2056, %v2144
      %v2146 = vpop.f32.mrf.mxu0
      %v2147 = vadd.f32 %v2058, %v2146
      %2148 = vmatmul.bf16.gmra.mxu0 %v1549
      %v2149 = vpop.f32.mrf.mxu0
      %v2150 = vadd.f32 %v2061, %v2149
      %v2151 = vpop.f32.mrf.mxu0
      %v2152 = vadd.f32 %v2063, %v2151
      %2153 = vmatmul.bf16.gmra.mxu0 %v1552
      %v2154 = vpop.f32.mrf.mxu0
      %v2155 = vadd.f32 %v2066, %v2154
      %v2156 = vpop.f32.mrf.mxu0
      %v2157 = vadd.f32 %v2068, %v2156
      %2158 = vmatmul.bf16.gmra.mxu0 %v1555
      %v2159 = vpop.f32.mrf.mxu0
      %v2160 = vadd.f32 %v2071, %v2159
      %v2161 = vpop.f32.mrf.mxu0
      %v2162 = vadd.f32 %v2073, %v2161
      %2163 = vmatmul.bf16.gmra.mxu0 %v1558
      %v2164 = vpop.f32.mrf.mxu0
      %v2165 = vadd.f32 %v2076, %v2164
      %v2166 = vpop.f32.mrf.mxu0
      %v2167 = vadd.f32 %v2078, %v2166
      %2168 = vmatmul.bf16.gmra.mxu0 %v1561
      %v2169 = vpop.f32.mrf.mxu0
      %v2170 = vadd.f32 %v2081, %v2169
      %v2171 = vpop.f32.mrf.mxu0
      %v2172 = vadd.f32 %v2083, %v2171
      %2173 = vmatmul.bf16.gmra.mxu0 %v1564
      %v2174 = vpop.f32.mrf.mxu0
      %v2175 = vadd.f32 %v2086, %v2174
      %v2176 = vpop.f32.mrf.mxu0
      %v2177 = vadd.f32 %v2088, %v2176
      %2178 = vmatmul.bf16.gmra.mxu0 %v1567
      %v2179 = vpop.f32.mrf.mxu0
      %v2180 = vadd.f32 %v2091, %v2179
      %v2181 = vpop.f32.mrf.mxu0
      %v2182 = vadd.f32 %v2093, %v2181
      %2183 = vmatmul.bf16.gmra.mxu0 %v1570
      %v2184 = vpop.f32.mrf.mxu0
      %v2185 = vadd.f32 %v2096, %v2184
      %v2186 = vpop.f32.mrf.mxu0
      %v2187 = vadd.f32 %v2098, %v2186
      %2188 = vmatmul.bf16.gmra.mxu0 %v1573
      %v2189 = vpop.f32.mrf.mxu0
      %v2190 = vadd.f32 %v2101, %v2189
      %v2191 = vpop.f32.mrf.mxu0
      %v2192 = vadd.f32 %v2103, %v2191
      %2193 = vmatmul.bf16.gmra.mxu0 %v1576
      %v2194 = vpop.f32.mrf.mxu0
      %v2195 = vadd.f32 %v2106, %v2194
      %v2196 = vpop.f32.mrf.mxu0
      %v2197 = vadd.f32 %v2108, %v2196
      %2198 = vmatmul.bf16.gmra.mxu0 %v1579
      %v2199 = vpop.f32.mrf.mxu0
      %v2200 = vadd.f32 %v2111, %v2199
      %v2201 = vpop.f32.mrf.mxu0
      %v2202 = vadd.f32 %v2113, %v2201
      %2203 = vdwg.mxu0
      %v2204 = vmax.f32 %v2125, 0.0
      %v2205 = vmax.f32 %v2127, 0.0
      %v2206 = vmax.f32 %v2130, 0.0
      %v2207 = vmax.f32 %v2132, 0.0
      %v2208 = vmax.f32 %v2135, 0.0
      %v2209 = vmax.f32 %v2137, 0.0
      %v2210 = vmax.f32 %v2140, 0.0
      %v2211 = vmax.f32 %v2142, 0.0
      %v2212 = vmax.f32 %v2145, 0.0
      %v2213 = vmax.f32 %v2147, 0.0
      %v2214 = vmax.f32 %v2150, 0.0
      %v2215 = vmax.f32 %v2152, 0.0
      %v2216 = vmax.f32 %v2155, 0.0
      %v2217 = vmax.f32 %v2157, 0.0
      %v2218 = vmax.f32 %v2160, 0.0
      %v2219 = vmax.f32 %v2162, 0.0
      %v2220 = vmax.f32 %v2165, 0.0
      %v2221 = vmax.f32 %v2167, 0.0
      %v2222 = vmax.f32 %v2170, 0.0
      %v2223 = vmax.f32 %v2172, 0.0
      %v2224 = vmax.f32 %v2175, 0.0
      %v2225 = vmax.f32 %v2177, 0.0
      %v2226 = vmax.f32 %v2180, 0.0
      %v2227 = vmax.f32 %v2182, 0.0
      %v2228 = vmax.f32 %v2185, 0.0
      %v2229 = vmax.f32 %v2187, 0.0
      %v2230 = vmax.f32 %v2190, 0.0
      %v2231 = vmax.f32 %v2192, 0.0
      %v2232 = vmax.f32 %v2195, 0.0
      %v2233 = vmax.f32 %v2197, 0.0
      %v2234 = vmax.f32 %v2200, 0.0
      %v2235 = vmax.f32 %v2202, 0.0
      %v2236 = vpack.c.bf16 %v2205, %v2204
      %v2237 = vpack.c.bf16 %v2207, %v2206
      %v2238 = vpack.c.bf16 %v2209, %v2208
      %v2239 = vpack.c.bf16 %v2211, %v2210
      %v2240 = vpack.c.bf16 %v2213, %v2212
      %v2241 = vpack.c.bf16 %v2215, %v2214
      %v2242 = vpack.c.bf16 %v2217, %v2216
      %v2243 = vpack.c.bf16 %v2219, %v2218
      %v2244 = vpack.c.bf16 %v2221, %v2220
      %v2245 = vpack.c.bf16 %v2223, %v2222
      %v2246 = vpack.c.bf16 %v2225, %v2224
      %v2247 = vpack.c.bf16 %v2227, %v2226
      %v2248 = vpack.c.bf16 %v2229, %v2228
      %v2249 = vpack.c.bf16 %v2231, %v2230
      %v2250 = vpack.c.bf16 %v2233, %v2232
      %v2251 = vpack.c.bf16 %v2235, %v2234
      %v2252 = vld [vmem:[%s3] sm:$0xf]
      %v2253 = vld [vmem:[%s3 + $0x4] sm:$0xf]
      %v2254 = vld [vmem:[%s3 + $0x8] sm:$0xf]
      %v2255 = vld [vmem:[%s3 + $0xc] sm:$0xf]
      %v2256 = vld [vmem:[%s3 + $0x10] sm:$0xf]
      %v2257 = vld [vmem:[%s3 + $0x14] sm:$0xf]
      %v2258 = vld [vmem:[%s3 + $0x18] sm:$0xf]
      %v2259 = vld [vmem:[%s3 + $0x1c] sm:$0xf]
      %v2260 = vld [vmem:[%s3 + $0x20] sm:$0xf]
      %v2261 = vld [vmem:[%s3 + $0x24] sm:$0xf]
      %v2262 = vld [vmem:[%s3 + $0x28] sm:$0xf]
      %v2263 = vld [vmem:[%s3 + $0x2c] sm:$0xf]
      %v2264 = vld [vmem:[%s3 + $0x30] sm:$0xf]
      %v2265 = vld [vmem:[%s3 + $0x34] sm:$0xf]
      %v2266 = vld [vmem:[%s3 + $0x38] sm:$0xf]
      %v2267 = vld [vmem:[%s3 + $0x3c] sm:$0xf]
      %v2268 = vld [vmem:[%s4] sm:$0x1]
      %v2270 = vperm.slane %v2268, 0
      %v2288 = vunpack.c.l.b16 %v2252
      %v2289 = vunpack.c.l.b16 %v2253
      %v2290 = vunpack.c.l.b16 %v2254
      %v2291 = vunpack.c.l.b16 %v2255
      %v2292 = vunpack.c.l.b16 %v2256
      %v2293 = vunpack.c.l.b16 %v2257
      %v2294 = vunpack.c.l.b16 %v2258
      %v2295 = vunpack.c.l.b16 %v2259
      %v2296 = vunpack.c.l.b16 %v2260
      %v2297 = vunpack.c.l.b16 %v2261
      %v2298 = vunpack.c.l.b16 %v2262
      %v2299 = vunpack.c.l.b16 %v2263
      %v2300 = vunpack.c.l.b16 %v2264
      %v2301 = vunpack.c.l.b16 %v2265
      %v2302 = vunpack.c.l.b16 %v2266
      %v2303 = vunpack.c.l.b16 %v2267
      %v2304 = vpack.c.b16 %v2289, %v2288
      %v2305 = vpack.c.b16 %v2291, %v2290
      %v2306 = vpack.c.b16 %v2293, %v2292
      %v2307 = vpack.c.b16 %v2295, %v2294
      %v2308 = vpack.c.b16 %v2297, %v2296
      %v2309 = vpack.c.b16 %v2299, %v2298
      %v2310 = vpack.c.b16 %v2301, %v2300
      %v2311 = vpack.c.b16 %v2303, %v2302
      %2320 = vmatpush.bf16.msra.mxu0 %v2311
      %2321 = vmatpush.bf16.msra.mxu0 %v2310
      %2322 = vmatpush.bf16.msra.mxu0 %v2309
      %2323 = vmatpush.bf16.msra.mxu0 %v2308
      %2324 = vmatpush.bf16.msra.mxu0 %v2307
      %2325 = vmatpush.bf16.msra.mxu0 %v2306
      %2326 = vmatpush.bf16.msra.mxu0 %v2305
      %2327 = vmatpush.bf16.msra.mxu0 %v2304
      %2328 = vmatmul.bf16.gmra.mxu0 %v2236
      %v2329 = vpop.f32.mrf.mxu0
      %v2330 = vadd.f32 %v2270, %v2329
      %v2331 = vpop.f32.mrf.mxu0
      %v2332 = vadd.f32 %v2270, %v2331
      %2333 = vmatmul.bf16.gmra.mxu0 %v2237
      %v2334 = vpop.f32.mrf.mxu0
      %v2335 = vadd.f32 %v2270, %v2334
      %v2336 = vpop.f32.mrf.mxu0
      %v2337 = vadd.f32 %v2270, %v2336
      %2338 = vmatmul.bf16.gmra.mxu0 %v2238
      %v2339 = vpop.f32.mrf.mxu0
      %v2340 = vadd.f32 %v2270, %v2339
      %v2341 = vpop.f32.mrf.mxu0
      %v2342 = vadd.f32 %v2270, %v2341
      %2343 = vmatmul.bf16.gmra.mxu0 %v2239
      %v2344 = vpop.f32.mrf.mxu0
      %v2345 = vadd.f32 %v2270, %v2344
      %v2346 = vpop.f32.mrf.mxu0
      %v2347 = vadd.f32 %v2270, %v2346
      %2348 = vmatmul.bf16.gmra.mxu0 %v2240
      %v2349 = vpop.f32.mrf.mxu0
      %v2350 = vadd.f32 %v2270, %v2349
      %v2351 = vpop.f32.mrf.mxu0
      %v2352 = vadd.f32 %v2270, %v2351
      %2353 = vmatmul.bf16.gmra.mxu0 %v2241
      %v2354 = vpop.f32.mrf.mxu0
      %v2355 = vadd.f32 %v2270, %v2354
      %v2356 = vpop.f32.mrf.mxu0
      %v2357 = vadd.f32 %v2270, %v2356
      %2358 = vmatmul.bf16.gmra.mxu0 %v2242
      %v2359 = vpop.f32.mrf.mxu0
      %v2360 = vadd.f32 %v2270, %v2359
      %v2361 = vpop.f32.mrf.mxu0
      %v2362 = vadd.f32 %v2270, %v2361
      %2363 = vmatmul.bf16.gmra.mxu0 %v2243
      %v2364 = vpop.f32.mrf.mxu0
      %v2365 = vadd.f32 %v2270, %v2364
      %v2366 = vpop.f32.mrf.mxu0
      %v2367 = vadd.f32 %v2270, %v2366
      %2368 = vmatmul.bf16.gmra.mxu0 %v2244
      %v2369 = vpop.f32.mrf.mxu0
      %v2370 = vadd.f32 %v2270, %v2369
      %v2371 = vpop.f32.mrf.mxu0
      %v2372 = vadd.f32 %v2270, %v2371
      %2373 = vmatmul.bf16.gmra.mxu0 %v2245
      %v2374 = vpop.f32.mrf.mxu0
      %v2375 = vadd.f32 %v2270, %v2374
      %v2376 = vpop.f32.mrf.mxu0
      %v2377 = vadd.f32 %v2270, %v2376
      %2378 = vmatmul.bf16.gmra.mxu0 %v2246
      %v2379 = vpop.f32.mrf.mxu0
      %v2380 = vadd.f32 %v2270, %v2379
      %v2381 = vpop.f32.mrf.mxu0
      %v2382 = vadd.f32 %v2270, %v2381
      %2383 = vmatmul.bf16.gmra.mxu0 %v2247
      %v2384 = vpop.f32.mrf.mxu0
      %v2385 = vadd.f32 %v2270, %v2384
      %v2386 = vpop.f32.mrf.mxu0
      %v2387 = vadd.f32 %v2270, %v2386
      %2388 = vmatmul.bf16.gmra.mxu0 %v2248
      %v2389 = vpop.f32.mrf.mxu0
      %v2390 = vadd.f32 %v2270, %v2389
      %v2391 = vpop.f32.mrf.mxu0
      %v2392 = vadd.f32 %v2270, %v2391
      %2393 = vmatmul.bf16.gmra.mxu0 %v2249
      %v2394 = vpop.f32.mrf.mxu0
      %v2395 = vadd.f32 %v2270, %v2394
      %v2396 = vpop.f32.mrf.mxu0
      %v2397 = vadd.f32 %v2270, %v2396
      %2398 = vmatmul.bf16.gmra.mxu0 %v2250
      %v2399 = vpop.f32.mrf.mxu0
      %v2400 = vadd.f32 %v2270, %v2399
      %v2401 = vpop.f32.mrf.mxu0
      %v2402 = vadd.f32 %v2270, %v2401
      %2403 = vmatmul.bf16.gmra.mxu0 %v2251
      %v2404 = vpop.f32.mrf.mxu0
      %v2405 = vadd.f32 %v2270, %v2404
      %v2406 = vpop.f32.mrf.mxu0
      %v2407 = vadd.f32 %v2270, %v2406
      %2408 = vdwg.mxu0
      %v2409 = vmax.f32 %v2330, 0.0
      %v2410 = vmax.f32 %v2332, 0.0
      %v2411 = vmax.f32 %v2335, 0.0
      %v2412 = vmax.f32 %v2337, 0.0
      %v2413 = vmax.f32 %v2340, 0.0
      %v2414 = vmax.f32 %v2342, 0.0
      %v2415 = vmax.f32 %v2345, 0.0
      %v2416 = vmax.f32 %v2347, 0.0
      %v2417 = vmax.f32 %v2350, 0.0
      %v2418 = vmax.f32 %v2352, 0.0
      %v2419 = vmax.f32 %v2355, 0.0
      %v2420 = vmax.f32 %v2357, 0.0
      %v2421 = vmax.f32 %v2360, 0.0
      %v2422 = vmax.f32 %v2362, 0.0
      %v2423 = vmax.f32 %v2365, 0.0
      %v2424 = vmax.f32 %v2367, 0.0
      %v2425 = vmax.f32 %v2370, 0.0
      %v2426 = vmax.f32 %v2372, 0.0
      %v2427 = vmax.f32 %v2375, 0.0
      %v2428 = vmax.f32 %v2377, 0.0
      %v2429 = vmax.f32 %v2380, 0.0
      %v2430 = vmax.f32 %v2382, 0.0
      %v2431 = vmax.f32 %v2385, 0.0
      %v2432 = vmax.f32 %v2387, 0.0
      %v2433 = vmax.f32 %v2390, 0.0
      %v2434 = vmax.f32 %v2392, 0.0
      %v2435 = vmax.f32 %v2395, 0.0
      %v2436 = vmax.f32 %v2397, 0.0
      %v2437 = vmax.f32 %v2400, 0.0
      %v2438 = vmax.f32 %v2402, 0.0
      %v2439 = vmax.f32 %v2405, 0.0
      %v2440 = vmax.f32 %v2407, 0.0
      %v2441 = vpack.c.bf16 %v2410, %v2409
      %v2442 = vpack.c.bf16 %v2412, %v2411
      %v2443 = vpack.c.bf16 %v2414, %v2413
      %v2444 = vpack.c.bf16 %v2416, %v2415
      %v2445 = vpack.c.bf16 %v2418, %v2417
      %v2446 = vpack.c.bf16 %v2420, %v2419
      %v2447 = vpack.c.bf16 %v2422, %v2421
      %v2448 = vpack.c.bf16 %v2424, %v2423
      %v2449 = vpack.c.bf16 %v2426, %v2425
      %v2450 = vpack.c.bf16 %v2428, %v2427
      %v2451 = vpack.c.bf16 %v2430, %v2429
      %v2452 = vpack.c.bf16 %v2432, %v2431
      %v2453 = vpack.c.bf16 %v2434, %v2433
      %v2454 = vpack.c.bf16 %v2436, %v2435
      %v2455 = vpack.c.bf16 %v2438, %v2437
      %v2456 = vpack.c.bf16 %v2440, %v2439
      %v2457 = vld [vmem:[%s5] sm:$0xf]
      %v2458 = vld [vmem:[%s5 + $0x4] sm:$0xf]
      %v2459 = vld [vmem:[%s5 + $0x8] sm:$0xf]
      %v2460 = vld [vmem:[%s5 + $0xc] sm:$0xf]
      %v2461 = vld [vmem:[%s5 + $0x10] sm:$0xf]
      %v2462 = vld [vmem:[%s5 + $0x14] sm:$0xf]
      %v2463 = vld [vmem:[%s5 + $0x18] sm:$0xf]
      %v2464 = vld [vmem:[%s5 + $0x1c] sm:$0xf]
      %v2465 = vld [vmem:[%s5 + $0x20] sm:$0xf]
      %v2466 = vld [vmem:[%s5 + $0x24] sm:$0xf]
      %v2467 = vld [vmem:[%s5 + $0x28] sm:$0xf]
      %v2468 = vld [vmem:[%s5 + $0x2c] sm:$0xf]
      %v2469 = vld [vmem:[%s5 + $0x30] sm:$0xf]
      %v2470 = vld [vmem:[%s5 + $0x34] sm:$0xf]
      %v2471 = vld [vmem:[%s5 + $0x38] sm:$0xf]
      %v2472 = vld [vmem:[%s5 + $0x3c] sm:$0xf]
      %v2473 = vld [vmem:[%s6] sm:$0x1]
      %v2475 = vperm.slane %v2473, 0
      %v2493 = vunpack.c.l.b16 %v2457
      %v2494 = vunpack.c.l.b16 %v2458
      %v2495 = vunpack.c.l.b16 %v2459
      %v2496 = vunpack.c.l.b16 %v2460
      %v2497 = vunpack.c.l.b16 %v2461
      %v2498 = vunpack.c.l.b16 %v2462
      %v2499 = vunpack.c.l.b16 %v2463
      %v2500 = vunpack.c.l.b16 %v2464
      %v2501 = vunpack.c.l.b16 %v2465
      %v2502 = vunpack.c.l.b16 %v2466
      %v2503 = vunpack.c.l.b16 %v2467
      %v2504 = vunpack.c.l.b16 %v2468
      %v2505 = vunpack.c.l.b16 %v2469
      %v2506 = vunpack.c.l.b16 %v2470
      %v2507 = vunpack.c.l.b16 %v2471
      %v2508 = vunpack.c.l.b16 %v2472
      %v2509 = vpack.c.b16 %v2494, %v2493
      %v2510 = vpack.c.b16 %v2496, %v2495
      %v2511 = vpack.c.b16 %v2498, %v2497
      %v2512 = vpack.c.b16 %v2500, %v2499
      %v2513 = vpack.c.b16 %v2502, %v2501
      %v2514 = vpack.c.b16 %v2504, %v2503
      %v2515 = vpack.c.b16 %v2506, %v2505
      %v2516 = vpack.c.b16 %v2508, %v2507
      %2525 = vmatpush.bf16.msra.mxu0 %v2516
      %2526 = vmatpush.bf16.msra.mxu0 %v2515
      %2527 = vmatpush.bf16.msra.mxu0 %v2514
      %2528 = vmatpush.bf16.msra.mxu0 %v2513
      %2529 = vmatpush.bf16.msra.mxu0 %v2512
      %2530 = vmatpush.bf16.msra.mxu0 %v2511
      %2531 = vmatpush.bf16.msra.mxu0 %v2510
      %2532 = vmatpush.bf16.msra.mxu0 %v2509
      %2533 = vmatmul.bf16.gmra.mxu0 %v2441
      %v2534 = vpop.f32.mrf.mxu0
      %v2535 = vadd.f32 %v2475, %v2534
      %v2536 = vpop.f32.mrf.mxu0
      %v2537 = vadd.f32 %v2475, %v2536
      %2538 = vmatmul.bf16.gmra.mxu0 %v2442
      %v2539 = vpop.f32.mrf.mxu0
      %v2540 = vadd.f32 %v2475, %v2539
      %v2541 = vpop.f32.mrf.mxu0
      %v2542 = vadd.f32 %v2475, %v2541
      %2543 = vmatmul.bf16.gmra.mxu0 %v2443
      %v2544 = vpop.f32.mrf.mxu0
      %v2545 = vadd.f32 %v2475, %v2544
      %v2546 = vpop.f32.mrf.mxu0
      %v2547 = vadd.f32 %v2475, %v2546
      %2548 = vmatmul.bf16.gmra.mxu0 %v2444
      %v2549 = vpop.f32.mrf.mxu0
      %v2550 = vadd.f32 %v2475, %v2549
      %v2551 = vpop.f32.mrf.mxu0
      %v2552 = vadd.f32 %v2475, %v2551
      %2553 = vmatmul.bf16.gmra.mxu0 %v2445
      %v2554 = vpop.f32.mrf.mxu0
      %v2555 = vadd.f32 %v2475, %v2554
      %v2556 = vpop.f32.mrf.mxu0
      %v2557 = vadd.f32 %v2475, %v2556
      %2558 = vmatmul.bf16.gmra.mxu0 %v2446
      %v2559 = vpop.f32.mrf.mxu0
      %v2560 = vadd.f32 %v2475, %v2559
      %v2561 = vpop.f32.mrf.mxu0
      %v2562 = vadd.f32 %v2475, %v2561
      %2563 = vmatmul.bf16.gmra.mxu0 %v2447
      %v2564 = vpop.f32.mrf.mxu0
      %v2565 = vadd.f32 %v2475, %v2564
      %v2566 = vpop.f32.mrf.mxu0
      %v2567 = vadd.f32 %v2475, %v2566
      %2568 = vmatmul.bf16.gmra.mxu0 %v2448
      %v2569 = vpop.f32.mrf.mxu0
      %v2570 = vadd.f32 %v2475, %v2569
      %v2571 = vpop.f32.mrf.mxu0
      %v2572 = vadd.f32 %v2475, %v2571
      %2573 = vmatmul.bf16.gmra.mxu0 %v2449
      %v2574 = vpop.f32.mrf.mxu0
      %v2575 = vadd.f32 %v2475, %v2574
      %v2576 = vpop.f32.mrf.mxu0
      %v2577 = vadd.f32 %v2475, %v2576
      %2578 = vmatmul.bf16.gmra.mxu0 %v2450
      %v2579 = vpop.f32.mrf.mxu0
      %v2580 = vadd.f32 %v2475, %v2579
      %v2581 = vpop.f32.mrf.mxu0
      %v2582 = vadd.f32 %v2475, %v2581
      %2583 = vmatmul.bf16.gmra.mxu0 %v2451
      %v2584 = vpop.f32.mrf.mxu0
      %v2585 = vadd.f32 %v2475, %v2584
      %v2586 = vpop.f32.mrf.mxu0
      %v2587 = vadd.f32 %v2475, %v2586
      %2588 = vmatmul.bf16.gmra.mxu0 %v2452
      %v2589 = vpop.f32.mrf.mxu0
      %v2590 = vadd.f32 %v2475, %v2589
      %v2591 = vpop.f32.mrf.mxu0
      %v2592 = vadd.f32 %v2475, %v2591
      %2593 = vmatmul.bf16.gmra.mxu0 %v2453
      %v2594 = vpop.f32.mrf.mxu0
      %v2595 = vadd.f32 %v2475, %v2594
      %v2596 = vpop.f32.mrf.mxu0
      %v2597 = vadd.f32 %v2475, %v2596
      %2598 = vmatmul.bf16.gmra.mxu0 %v2454
      %v2599 = vpop.f32.mrf.mxu0
      %v2600 = vadd.f32 %v2475, %v2599
      %v2601 = vpop.f32.mrf.mxu0
      %v2602 = vadd.f32 %v2475, %v2601
      %2603 = vmatmul.bf16.gmra.mxu0 %v2455
      %v2604 = vpop.f32.mrf.mxu0
      %v2605 = vadd.f32 %v2475, %v2604
      %v2606 = vpop.f32.mrf.mxu0
      %v2607 = vadd.f32 %v2475, %v2606
      %2608 = vmatmul.bf16.gmra.mxu0 %v2456
      %v2609 = vpop.f32.mrf.mxu0
      %v2610 = vadd.f32 %v2475, %v2609
      %v2611 = vpop.f32.mrf.mxu0
      %v2612 = vadd.f32 %v2475, %v2611
      %2613 = vdwg.mxu0
      %v2614 = vmax.f32 %v2535, 0.0
      %v2615 = vmax.f32 %v2537, 0.0
      %v2616 = vmax.f32 %v2540, 0.0
      %v2617 = vmax.f32 %v2542, 0.0
      %v2618 = vmax.f32 %v2545, 0.0
      %v2619 = vmax.f32 %v2547, 0.0
      %v2620 = vmax.f32 %v2550, 0.0
      %v2621 = vmax.f32 %v2552, 0.0
      %v2622 = vmax.f32 %v2555, 0.0
      %v2623 = vmax.f32 %v2557, 0.0
      %v2624 = vmax.f32 %v2560, 0.0
      %v2625 = vmax.f32 %v2562, 0.0
      %v2626 = vmax.f32 %v2565, 0.0
      %v2627 = vmax.f32 %v2567, 0.0
      %v2628 = vmax.f32 %v2570, 0.0
      %v2629 = vmax.f32 %v2572, 0.0
      %v2630 = vmax.f32 %v2575, 0.0
      %v2631 = vmax.f32 %v2577, 0.0
      %v2632 = vmax.f32 %v2580, 0.0
      %v2633 = vmax.f32 %v2582, 0.0
      %v2634 = vmax.f32 %v2585, 0.0
      %v2635 = vmax.f32 %v2587, 0.0
      %v2636 = vmax.f32 %v2590, 0.0
      %v2637 = vmax.f32 %v2592, 0.0
      %v2638 = vmax.f32 %v2595, 0.0
      %v2639 = vmax.f32 %v2597, 0.0
      %v2640 = vmax.f32 %v2600, 0.0
      %v2641 = vmax.f32 %v2602, 0.0
      %v2642 = vmax.f32 %v2605, 0.0
      %v2643 = vmax.f32 %v2607, 0.0
      %v2644 = vmax.f32 %v2610, 0.0
      %v2645 = vmax.f32 %v2612, 0.0
      %v2646 = vpack.c.bf16 %v2615, %v2614
      %v2647 = vpack.c.bf16 %v2617, %v2616
      %v2648 = vpack.c.bf16 %v2619, %v2618
      %v2649 = vpack.c.bf16 %v2621, %v2620
      %v2650 = vpack.c.bf16 %v2623, %v2622
      %v2651 = vpack.c.bf16 %v2625, %v2624
      %v2652 = vpack.c.bf16 %v2627, %v2626
      %v2653 = vpack.c.bf16 %v2629, %v2628
      %v2654 = vpack.c.bf16 %v2631, %v2630
      %v2655 = vpack.c.bf16 %v2633, %v2632
      %v2656 = vpack.c.bf16 %v2635, %v2634
      %v2657 = vpack.c.bf16 %v2637, %v2636
      %v2658 = vpack.c.bf16 %v2639, %v2638
      %v2659 = vpack.c.bf16 %v2641, %v2640
      %v2660 = vpack.c.bf16 %v2643, %v2642
      %v2661 = vpack.c.bf16 %v2645, %v2644
      %v2662 = vld [vmem:[%s7] sm:$0xf]
      %v2663 = vld [vmem:[%s7 + $0x4] sm:$0xf]
      %v2664 = vld [vmem:[%s7 + $0x8] sm:$0xf]
      %v2665 = vld [vmem:[%s7 + $0xc] sm:$0xf]
      %v2666 = vld [vmem:[%s7 + $0x10] sm:$0xf]
      %v2667 = vld [vmem:[%s7 + $0x14] sm:$0xf]
      %v2668 = vld [vmem:[%s7 + $0x18] sm:$0xf]
      %v2669 = vld [vmem:[%s7 + $0x1c] sm:$0xf]
      %v2670 = vld [vmem:[%s7 + $0x20] sm:$0xf]
      %v2671 = vld [vmem:[%s7 + $0x24] sm:$0xf]
      %v2672 = vld [vmem:[%s7 + $0x28] sm:$0xf]
      %v2673 = vld [vmem:[%s7 + $0x2c] sm:$0xf]
      %v2674 = vld [vmem:[%s7 + $0x30] sm:$0xf]
      %v2675 = vld [vmem:[%s7 + $0x34] sm:$0xf]
      %v2676 = vld [vmem:[%s7 + $0x38] sm:$0xf]
      %v2677 = vld [vmem:[%s7 + $0x3c] sm:$0xf]
      %v2678 = vld [vmem:[%s8] sm:$0x1]
      %v2680 = vperm.slane %v2678, 0
      %v2698 = vunpack.c.l.b16 %v2662
      %v2699 = vunpack.c.l.b16 %v2663
      %v2700 = vunpack.c.l.b16 %v2664
      %v2701 = vunpack.c.l.b16 %v2665
      %v2702 = vunpack.c.l.b16 %v2666
      %v2703 = vunpack.c.l.b16 %v2667
      %v2704 = vunpack.c.l.b16 %v2668
      %v2705 = vunpack.c.l.b16 %v2669
      %v2706 = vunpack.c.l.b16 %v2670
      %v2707 = vunpack.c.l.b16 %v2671
      %v2708 = vunpack.c.l.b16 %v2672
      %v2709 = vunpack.c.l.b16 %v2673
      %v2710 = vunpack.c.l.b16 %v2674
      %v2711 = vunpack.c.l.b16 %v2675
      %v2712 = vunpack.c.l.b16 %v2676
      %v2713 = vunpack.c.l.b16 %v2677
      %v2714 = vpack.c.b16 %v2699, %v2698
      %v2715 = vpack.c.b16 %v2701, %v2700
      %v2716 = vpack.c.b16 %v2703, %v2702
      %v2717 = vpack.c.b16 %v2705, %v2704
      %v2718 = vpack.c.b16 %v2707, %v2706
      %v2719 = vpack.c.b16 %v2709, %v2708
      %v2720 = vpack.c.b16 %v2711, %v2710
      %v2721 = vpack.c.b16 %v2713, %v2712
      %2730 = vmatpush.bf16.msra.mxu0 %v2721
      %2731 = vmatpush.bf16.msra.mxu0 %v2720
      %2732 = vmatpush.bf16.msra.mxu0 %v2719
      %2733 = vmatpush.bf16.msra.mxu0 %v2718
      %2734 = vmatpush.bf16.msra.mxu0 %v2717
      %2735 = vmatpush.bf16.msra.mxu0 %v2716
      %2736 = vmatpush.bf16.msra.mxu0 %v2715
      %2737 = vmatpush.bf16.msra.mxu0 %v2714
      %2738 = vmatmul.bf16.gmra.mxu0 %v2646
      %v2739 = vpop.f32.mrf.mxu0
      %v2740 = vadd.f32 %v2680, %v2739
      %v2741 = vpop.f32.mrf.mxu0
      %v2742 = vadd.f32 %v2680, %v2741
      %2743 = vmatmul.bf16.gmra.mxu0 %v2647
      %v2744 = vpop.f32.mrf.mxu0
      %v2745 = vadd.f32 %v2680, %v2744
      %v2746 = vpop.f32.mrf.mxu0
      %v2747 = vadd.f32 %v2680, %v2746
      %2748 = vmatmul.bf16.gmra.mxu0 %v2648
      %v2749 = vpop.f32.mrf.mxu0
      %v2750 = vadd.f32 %v2680, %v2749
      %v2751 = vpop.f32.mrf.mxu0
      %v2752 = vadd.f32 %v2680, %v2751
      %2753 = vmatmul.bf16.gmra.mxu0 %v2649
      %v2754 = vpop.f32.mrf.mxu0
      %v2755 = vadd.f32 %v2680, %v2754
      %v2756 = vpop.f32.mrf.mxu0
      %v2757 = vadd.f32 %v2680, %v2756
      %2758 = vmatmul.bf16.gmra.mxu0 %v2650
      %v2759 = vpop.f32.mrf.mxu0
      %v2760 = vadd.f32 %v2680, %v2759
      %v2761 = vpop.f32.mrf.mxu0
      %v2762 = vadd.f32 %v2680, %v2761
      %2763 = vmatmul.bf16.gmra.mxu0 %v2651
      %v2764 = vpop.f32.mrf.mxu0
      %v2765 = vadd.f32 %v2680, %v2764
      %v2766 = vpop.f32.mrf.mxu0
      %v2767 = vadd.f32 %v2680, %v2766
      %2768 = vmatmul.bf16.gmra.mxu0 %v2652
      %v2769 = vpop.f32.mrf.mxu0
      %v2770 = vadd.f32 %v2680, %v2769
      %v2771 = vpop.f32.mrf.mxu0
      %v2772 = vadd.f32 %v2680, %v2771
      %2773 = vmatmul.bf16.gmra.mxu0 %v2653
      %v2774 = vpop.f32.mrf.mxu0
      %v2775 = vadd.f32 %v2680, %v2774
      %v2776 = vpop.f32.mrf.mxu0
      %v2777 = vadd.f32 %v2680, %v2776
      %2778 = vmatmul.bf16.gmra.mxu0 %v2654
      %v2779 = vpop.f32.mrf.mxu0
      %v2780 = vadd.f32 %v2680, %v2779
      %v2781 = vpop.f32.mrf.mxu0
      %v2782 = vadd.f32 %v2680, %v2781
      %2783 = vmatmul.bf16.gmra.mxu0 %v2655
      %v2784 = vpop.f32.mrf.mxu0
      %v2785 = vadd.f32 %v2680, %v2784
      %v2786 = vpop.f32.mrf.mxu0
      %v2787 = vadd.f32 %v2680, %v2786
      %2788 = vmatmul.bf16.gmra.mxu0 %v2656
      %v2789 = vpop.f32.mrf.mxu0
      %v2790 = vadd.f32 %v2680, %v2789
      %v2791 = vpop.f32.mrf.mxu0
      %v2792 = vadd.f32 %v2680, %v2791
      %2793 = vmatmul.bf16.gmra.mxu0 %v2657
      %v2794 = vpop.f32.mrf.mxu0
      %v2795 = vadd.f32 %v2680, %v2794
      %v2796 = vpop.f32.mrf.mxu0
      %v2797 = vadd.f32 %v2680, %v2796
      %2798 = vmatmul.bf16.gmra.mxu0 %v2658
      %v2799 = vpop.f32.mrf.mxu0
      %v2800 = vadd.f32 %v2680, %v2799
      %v2801 = vpop.f32.mrf.mxu0
      %v2802 = vadd.f32 %v2680, %v2801
      %2803 = vmatmul.bf16.gmra.mxu0 %v2659
      %v2804 = vpop.f32.mrf.mxu0
      %v2805 = vadd.f32 %v2680, %v2804
      %v2806 = vpop.f32.mrf.mxu0
      %v2807 = vadd.f32 %v2680, %v2806
      %2808 = vmatmul.bf16.gmra.mxu0 %v2660
      %v2809 = vpop.f32.mrf.mxu0
      %v2810 = vadd.f32 %v2680, %v2809
      %v2811 = vpop.f32.mrf.mxu0
      %v2812 = vadd.f32 %v2680, %v2811
      %2813 = vmatmul.bf16.gmra.mxu0 %v2661
      %v2814 = vpop.f32.mrf.mxu0
      %v2815 = vadd.f32 %v2680, %v2814
      %v2816 = vpop.f32.mrf.mxu0
      %v2817 = vadd.f32 %v2680, %v2816
      %2818 = vdwg.mxu0
      %v2819 = vmax.f32 %v2740, 0.0
      %v2820 = vmax.f32 %v2742, 0.0
      %v2821 = vmax.f32 %v2745, 0.0
      %v2822 = vmax.f32 %v2747, 0.0
      %v2823 = vmax.f32 %v2750, 0.0
      %v2824 = vmax.f32 %v2752, 0.0
      %v2825 = vmax.f32 %v2755, 0.0
      %v2826 = vmax.f32 %v2757, 0.0
      %v2827 = vmax.f32 %v2760, 0.0
      %v2828 = vmax.f32 %v2762, 0.0
      %v2829 = vmax.f32 %v2765, 0.0
      %v2830 = vmax.f32 %v2767, 0.0
      %v2831 = vmax.f32 %v2770, 0.0
      %v2832 = vmax.f32 %v2772, 0.0
      %v2833 = vmax.f32 %v2775, 0.0
      %v2834 = vmax.f32 %v2777, 0.0
      %v2835 = vmax.f32 %v2780, 0.0
      %v2836 = vmax.f32 %v2782, 0.0
      %v2837 = vmax.f32 %v2785, 0.0
      %v2838 = vmax.f32 %v2787, 0.0
      %v2839 = vmax.f32 %v2790, 0.0
      %v2840 = vmax.f32 %v2792, 0.0
      %v2841 = vmax.f32 %v2795, 0.0
      %v2842 = vmax.f32 %v2797, 0.0
      %v2843 = vmax.f32 %v2800, 0.0
      %v2844 = vmax.f32 %v2802, 0.0
      %v2845 = vmax.f32 %v2805, 0.0
      %v2846 = vmax.f32 %v2807, 0.0
      %v2847 = vmax.f32 %v2810, 0.0
      %v2848 = vmax.f32 %v2812, 0.0
      %v2849 = vmax.f32 %v2815, 0.0
      %v2850 = vmax.f32 %v2817, 0.0
      %v2851 = vpack.c.bf16 %v2820, %v2819
      %v2852 = vpack.c.bf16 %v2822, %v2821
      %v2853 = vpack.c.bf16 %v2824, %v2823
      %v2854 = vpack.c.bf16 %v2826, %v2825
      %v2855 = vpack.c.bf16 %v2828, %v2827
      %v2856 = vpack.c.bf16 %v2830, %v2829
      %v2857 = vpack.c.bf16 %v2832, %v2831
      %v2858 = vpack.c.bf16 %v2834, %v2833
      %v2859 = vpack.c.bf16 %v2836, %v2835
      %v2860 = vpack.c.bf16 %v2838, %v2837
      %v2861 = vpack.c.bf16 %v2840, %v2839
      %v2862 = vpack.c.bf16 %v2842, %v2841
      %v2863 = vpack.c.bf16 %v2844, %v2843
      %v2864 = vpack.c.bf16 %v2846, %v2845
      %v2865 = vpack.c.bf16 %v2848, %v2847
      %v2866 = vpack.c.bf16 %v2850, %v2849
      %v2867 = vld [vmem:[%s9] sm:$0xf]
      %v2868 = vld [vmem:[%s9 + $0x4] sm:$0xf]
      %v2869 = vld [vmem:[%s9 + $0x8] sm:$0xf]
      %v2870 = vld [vmem:[%s9 + $0xc] sm:$0xf]
      %v2871 = vld [vmem:[%s9 + $0x10] sm:$0xf]
      %v2872 = vld [vmem:[%s9 + $0x14] sm:$0xf]
      %v2873 = vld [vmem:[%s9 + $0x18] sm:$0xf]
      %v2874 = vld [vmem:[%s9 + $0x1c] sm:$0xf]
      %v2875 = vld [vmem:[%s9 + $0x20] sm:$0xf]
      %v2876 = vld [vmem:[%s9 + $0x24] sm:$0xf]
      %v2877 = vld [vmem:[%s9 + $0x28] sm:$0xf]
      %v2878 = vld [vmem:[%s9 + $0x2c] sm:$0xf]
      %v2879 = vld [vmem:[%s9 + $0x30] sm:$0xf]
      %v2880 = vld [vmem:[%s9 + $0x34] sm:$0xf]
      %v2881 = vld [vmem:[%s9 + $0x38] sm:$0xf]
      %v2882 = vld [vmem:[%s9 + $0x3c] sm:$0xf]
      %v2883 = vld [vmem:[%s10] sm:$0x1]
      %v2885 = vperm.slane %v2883, 0
      %v2903 = vunpack.c.l.b16 %v2867
      %v2904 = vunpack.c.l.b16 %v2868
      %v2905 = vunpack.c.l.b16 %v2869
      %v2906 = vunpack.c.l.b16 %v2870
      %v2907 = vunpack.c.l.b16 %v2871
      %v2908 = vunpack.c.l.b16 %v2872
      %v2909 = vunpack.c.l.b16 %v2873
      %v2910 = vunpack.c.l.b16 %v2874
      %v2911 = vunpack.c.l.b16 %v2875
      %v2912 = vunpack.c.l.b16 %v2876
      %v2913 = vunpack.c.l.b16 %v2877
      %v2914 = vunpack.c.l.b16 %v2878
      %v2915 = vunpack.c.l.b16 %v2879
      %v2916 = vunpack.c.l.b16 %v2880
      %v2917 = vunpack.c.l.b16 %v2881
      %v2918 = vunpack.c.l.b16 %v2882
      %v2919 = vpack.c.b16 %v2904, %v2903
      %v2920 = vpack.c.b16 %v2906, %v2905
      %v2921 = vpack.c.b16 %v2908, %v2907
      %v2922 = vpack.c.b16 %v2910, %v2909
      %v2923 = vpack.c.b16 %v2912, %v2911
      %v2924 = vpack.c.b16 %v2914, %v2913
      %v2925 = vpack.c.b16 %v2916, %v2915
      %v2926 = vpack.c.b16 %v2918, %v2917
      %2935 = vmatpush.bf16.msra.mxu0 %v2926
      %2936 = vmatpush.bf16.msra.mxu0 %v2925
      %2937 = vmatpush.bf16.msra.mxu0 %v2924
      %2938 = vmatpush.bf16.msra.mxu0 %v2923
      %2939 = vmatpush.bf16.msra.mxu0 %v2922
      %2940 = vmatpush.bf16.msra.mxu0 %v2921
      %2941 = vmatpush.bf16.msra.mxu0 %v2920
      %2942 = vmatpush.bf16.msra.mxu0 %v2919
      %2943 = vmatmul.bf16.gmra.mxu0 %v2851
      %v2944 = vpop.f32.mrf.mxu0
      %v2945 = vadd.f32 %v2885, %v2944
      %v2946 = vpop.f32.mrf.mxu0
      %v2947 = vadd.f32 %v2885, %v2946
      %2948 = vmatmul.bf16.gmra.mxu0 %v2852
      %v2949 = vpop.f32.mrf.mxu0
      %v2950 = vadd.f32 %v2885, %v2949
      %v2951 = vpop.f32.mrf.mxu0
      %v2952 = vadd.f32 %v2885, %v2951
      %2953 = vmatmul.bf16.gmra.mxu0 %v2853
      %v2954 = vpop.f32.mrf.mxu0
      %v2955 = vadd.f32 %v2885, %v2954
      %v2956 = vpop.f32.mrf.mxu0
      %v2957 = vadd.f32 %v2885, %v2956
      %2958 = vmatmul.bf16.gmra.mxu0 %v2854
      %v2959 = vpop.f32.mrf.mxu0
      %v2960 = vadd.f32 %v2885, %v2959
      %v2961 = vpop.f32.mrf.mxu0
      %v2962 = vadd.f32 %v2885, %v2961
      %2963 = vmatmul.bf16.gmra.mxu0 %v2855
      %v2964 = vpop.f32.mrf.mxu0
      %v2965 = vadd.f32 %v2885, %v2964
      %v2966 = vpop.f32.mrf.mxu0
      %v2967 = vadd.f32 %v2885, %v2966
      %2968 = vmatmul.bf16.gmra.mxu0 %v2856
      %v2969 = vpop.f32.mrf.mxu0
      %v2970 = vadd.f32 %v2885, %v2969
      %v2971 = vpop.f32.mrf.mxu0
      %v2972 = vadd.f32 %v2885, %v2971
      %2973 = vmatmul.bf16.gmra.mxu0 %v2857
      %v2974 = vpop.f32.mrf.mxu0
      %v2975 = vadd.f32 %v2885, %v2974
      %v2976 = vpop.f32.mrf.mxu0
      %v2977 = vadd.f32 %v2885, %v2976
      %2978 = vmatmul.bf16.gmra.mxu0 %v2858
      %v2979 = vpop.f32.mrf.mxu0
      %v2980 = vadd.f32 %v2885, %v2979
      %v2981 = vpop.f32.mrf.mxu0
      %v2982 = vadd.f32 %v2885, %v2981
      %2983 = vmatmul.bf16.gmra.mxu0 %v2859
      %v2984 = vpop.f32.mrf.mxu0
      %v2985 = vadd.f32 %v2885, %v2984
      %v2986 = vpop.f32.mrf.mxu0
      %v2987 = vadd.f32 %v2885, %v2986
      %2988 = vmatmul.bf16.gmra.mxu0 %v2860
      %v2989 = vpop.f32.mrf.mxu0
      %v2990 = vadd.f32 %v2885, %v2989
      %v2991 = vpop.f32.mrf.mxu0
      %v2992 = vadd.f32 %v2885, %v2991
      %2993 = vmatmul.bf16.gmra.mxu0 %v2861
      %v2994 = vpop.f32.mrf.mxu0
      %v2995 = vadd.f32 %v2885, %v2994
      %v2996 = vpop.f32.mrf.mxu0
      %v2997 = vadd.f32 %v2885, %v2996
      %2998 = vmatmul.bf16.gmra.mxu0 %v2862
      %v2999 = vpop.f32.mrf.mxu0
      %v3000 = vadd.f32 %v2885, %v2999
      %v3001 = vpop.f32.mrf.mxu0
      %v3002 = vadd.f32 %v2885, %v3001
      %3003 = vmatmul.bf16.gmra.mxu0 %v2863
      %v3004 = vpop.f32.mrf.mxu0
      %v3005 = vadd.f32 %v2885, %v3004
      %v3006 = vpop.f32.mrf.mxu0
      %v3007 = vadd.f32 %v2885, %v3006
      %3008 = vmatmul.bf16.gmra.mxu0 %v2864
      %v3009 = vpop.f32.mrf.mxu0
      %v3010 = vadd.f32 %v2885, %v3009
      %v3011 = vpop.f32.mrf.mxu0
      %v3012 = vadd.f32 %v2885, %v3011
      %3013 = vmatmul.bf16.gmra.mxu0 %v2865
      %v3014 = vpop.f32.mrf.mxu0
      %v3015 = vadd.f32 %v2885, %v3014
      %v3016 = vpop.f32.mrf.mxu0
      %v3017 = vadd.f32 %v2885, %v3016
      %3018 = vmatmul.bf16.gmra.mxu0 %v2866
      %v3019 = vpop.f32.mrf.mxu0
      %v3020 = vadd.f32 %v2885, %v3019
      %v3021 = vpop.f32.mrf.mxu0
      %v3022 = vadd.f32 %v2885, %v3021
      %3023 = vdwg.mxu0
      %v3024 = vmax.f32 %v2945, 0.0
      %v3025 = vmax.f32 %v2947, 0.0
      %v3026 = vmax.f32 %v2950, 0.0
      %v3027 = vmax.f32 %v2952, 0.0
      %v3028 = vmax.f32 %v2955, 0.0
      %v3029 = vmax.f32 %v2957, 0.0
      %v3030 = vmax.f32 %v2960, 0.0
      %v3031 = vmax.f32 %v2962, 0.0
      %v3032 = vmax.f32 %v2965, 0.0
      %v3033 = vmax.f32 %v2967, 0.0
      %v3034 = vmax.f32 %v2970, 0.0
      %v3035 = vmax.f32 %v2972, 0.0
      %v3036 = vmax.f32 %v2975, 0.0
      %v3037 = vmax.f32 %v2977, 0.0
      %v3038 = vmax.f32 %v2980, 0.0
      %v3039 = vmax.f32 %v2982, 0.0
      %v3040 = vmax.f32 %v2985, 0.0
      %v3041 = vmax.f32 %v2987, 0.0
      %v3042 = vmax.f32 %v2990, 0.0
      %v3043 = vmax.f32 %v2992, 0.0
      %v3044 = vmax.f32 %v2995, 0.0
      %v3045 = vmax.f32 %v2997, 0.0
      %v3046 = vmax.f32 %v3000, 0.0
      %v3047 = vmax.f32 %v3002, 0.0
      %v3048 = vmax.f32 %v3005, 0.0
      %v3049 = vmax.f32 %v3007, 0.0
      %v3050 = vmax.f32 %v3010, 0.0
      %v3051 = vmax.f32 %v3012, 0.0
      %v3052 = vmax.f32 %v3015, 0.0
      %v3053 = vmax.f32 %v3017, 0.0
      %v3054 = vmax.f32 %v3020, 0.0
      %v3055 = vmax.f32 %v3022, 0.0
      %v3056 = vpack.c.bf16 %v3025, %v3024
      %v3057 = vpack.c.bf16 %v3027, %v3026
      %v3058 = vpack.c.bf16 %v3029, %v3028
      %v3059 = vpack.c.bf16 %v3031, %v3030
      %v3060 = vpack.c.bf16 %v3033, %v3032
      %v3061 = vpack.c.bf16 %v3035, %v3034
      %v3062 = vpack.c.bf16 %v3037, %v3036
      %v3063 = vpack.c.bf16 %v3039, %v3038
      %v3064 = vpack.c.bf16 %v3041, %v3040
      %v3065 = vpack.c.bf16 %v3043, %v3042
      %v3066 = vpack.c.bf16 %v3045, %v3044
      %v3067 = vpack.c.bf16 %v3047, %v3046
      %v3068 = vpack.c.bf16 %v3049, %v3048
      %v3069 = vpack.c.bf16 %v3051, %v3050
      %v3070 = vpack.c.bf16 %v3053, %v3052
      %v3071 = vpack.c.bf16 %v3055, %v3054
      %v3072 = vld [vmem:[%s11] sm:$0xf]
      %v3073 = vld [vmem:[%s11 + $0x4] sm:$0xf]
      %v3074 = vld [vmem:[%s11 + $0x8] sm:$0xf]
      %v3075 = vld [vmem:[%s11 + $0xc] sm:$0xf]
      %v3076 = vld [vmem:[%s11 + $0x10] sm:$0xf]
      %v3077 = vld [vmem:[%s11 + $0x14] sm:$0xf]
      %v3078 = vld [vmem:[%s11 + $0x18] sm:$0xf]
      %v3079 = vld [vmem:[%s11 + $0x1c] sm:$0xf]
      %v3080 = vld [vmem:[%s11 + $0x20] sm:$0xf]
      %v3081 = vld [vmem:[%s11 + $0x24] sm:$0xf]
      %v3082 = vld [vmem:[%s11 + $0x28] sm:$0xf]
      %v3083 = vld [vmem:[%s11 + $0x2c] sm:$0xf]
      %v3084 = vld [vmem:[%s11 + $0x30] sm:$0xf]
      %v3085 = vld [vmem:[%s11 + $0x34] sm:$0xf]
      %v3086 = vld [vmem:[%s11 + $0x38] sm:$0xf]
      %v3087 = vld [vmem:[%s11 + $0x3c] sm:$0xf]
      %v3088 = vld [vmem:[%s12] sm:$0x1]
      %v3090 = vperm.slane %v3088, 0
      %v3108 = vunpack.c.l.b16 %v3072
      %v3109 = vunpack.c.l.b16 %v3073
      %v3110 = vunpack.c.l.b16 %v3074
      %v3111 = vunpack.c.l.b16 %v3075
      %v3112 = vunpack.c.l.b16 %v3076
      %v3113 = vunpack.c.l.b16 %v3077
      %v3114 = vunpack.c.l.b16 %v3078
      %v3115 = vunpack.c.l.b16 %v3079
      %v3116 = vunpack.c.l.b16 %v3080
      %v3117 = vunpack.c.l.b16 %v3081
      %v3118 = vunpack.c.l.b16 %v3082
      %v3119 = vunpack.c.l.b16 %v3083
      %v3120 = vunpack.c.l.b16 %v3084
      %v3121 = vunpack.c.l.b16 %v3085
      %v3122 = vunpack.c.l.b16 %v3086
      %v3123 = vunpack.c.l.b16 %v3087
      %v3124 = vpack.c.b16 %v3109, %v3108
      %v3125 = vpack.c.b16 %v3111, %v3110
      %v3126 = vpack.c.b16 %v3113, %v3112
      %v3127 = vpack.c.b16 %v3115, %v3114
      %v3128 = vpack.c.b16 %v3117, %v3116
      %v3129 = vpack.c.b16 %v3119, %v3118
      %v3130 = vpack.c.b16 %v3121, %v3120
      %v3131 = vpack.c.b16 %v3123, %v3122
      %3140 = vmatpush.bf16.msra.mxu0 %v3131
      %3141 = vmatpush.bf16.msra.mxu0 %v3130
      %3142 = vmatpush.bf16.msra.mxu0 %v3129
      %3143 = vmatpush.bf16.msra.mxu0 %v3128
      %3144 = vmatpush.bf16.msra.mxu0 %v3127
      %3145 = vmatpush.bf16.msra.mxu0 %v3126
      %3146 = vmatpush.bf16.msra.mxu0 %v3125
      %3147 = vmatpush.bf16.msra.mxu0 %v3124
      %3148 = vmatmul.bf16.gmra.mxu0 %v3056
      %v3149 = vpop.f32.mrf.mxu0
      %v3150 = vadd.f32 %v3090, %v3149
      %v3151 = vpop.f32.mrf.mxu0
      %v3152 = vadd.f32 %v3090, %v3151
      %3153 = vmatmul.bf16.gmra.mxu0 %v3057
      %v3154 = vpop.f32.mrf.mxu0
      %v3155 = vadd.f32 %v3090, %v3154
      %v3156 = vpop.f32.mrf.mxu0
      %v3157 = vadd.f32 %v3090, %v3156
      %3158 = vmatmul.bf16.gmra.mxu0 %v3058
      %v3159 = vpop.f32.mrf.mxu0
      %v3160 = vadd.f32 %v3090, %v3159
      %v3161 = vpop.f32.mrf.mxu0
      %v3162 = vadd.f32 %v3090, %v3161
      %3163 = vmatmul.bf16.gmra.mxu0 %v3059
      %v3164 = vpop.f32.mrf.mxu0
      %v3165 = vadd.f32 %v3090, %v3164
      %v3166 = vpop.f32.mrf.mxu0
      %v3167 = vadd.f32 %v3090, %v3166
      %3168 = vmatmul.bf16.gmra.mxu0 %v3060
      %v3169 = vpop.f32.mrf.mxu0
      %v3170 = vadd.f32 %v3090, %v3169
      %v3171 = vpop.f32.mrf.mxu0
      %v3172 = vadd.f32 %v3090, %v3171
      %3173 = vmatmul.bf16.gmra.mxu0 %v3061
      %v3174 = vpop.f32.mrf.mxu0
      %v3175 = vadd.f32 %v3090, %v3174
      %v3176 = vpop.f32.mrf.mxu0
      %v3177 = vadd.f32 %v3090, %v3176
      %3178 = vmatmul.bf16.gmra.mxu0 %v3062
      %v3179 = vpop.f32.mrf.mxu0
      %v3180 = vadd.f32 %v3090, %v3179
      %v3181 = vpop.f32.mrf.mxu0
      %v3182 = vadd.f32 %v3090, %v3181
      %3183 = vmatmul.bf16.gmra.mxu0 %v3063
      %v3184 = vpop.f32.mrf.mxu0
      %v3185 = vadd.f32 %v3090, %v3184
      %v3186 = vpop.f32.mrf.mxu0
      %v3187 = vadd.f32 %v3090, %v3186
      %3188 = vmatmul.bf16.gmra.mxu0 %v3064
      %v3189 = vpop.f32.mrf.mxu0
      %v3190 = vadd.f32 %v3090, %v3189
      %v3191 = vpop.f32.mrf.mxu0
      %v3192 = vadd.f32 %v3090, %v3191
      %3193 = vmatmul.bf16.gmra.mxu0 %v3065
      %v3194 = vpop.f32.mrf.mxu0
      %v3195 = vadd.f32 %v3090, %v3194
      %v3196 = vpop.f32.mrf.mxu0
      %v3197 = vadd.f32 %v3090, %v3196
      %3198 = vmatmul.bf16.gmra.mxu0 %v3066
      %v3199 = vpop.f32.mrf.mxu0
      %v3200 = vadd.f32 %v3090, %v3199
      %v3201 = vpop.f32.mrf.mxu0
      %v3202 = vadd.f32 %v3090, %v3201
      %3203 = vmatmul.bf16.gmra.mxu0 %v3067
      %v3204 = vpop.f32.mrf.mxu0
      %v3205 = vadd.f32 %v3090, %v3204
      %v3206 = vpop.f32.mrf.mxu0
      %v3207 = vadd.f32 %v3090, %v3206
      %3208 = vmatmul.bf16.gmra.mxu0 %v3068
      %v3209 = vpop.f32.mrf.mxu0
      %v3210 = vadd.f32 %v3090, %v3209
      %v3211 = vpop.f32.mrf.mxu0
      %v3212 = vadd.f32 %v3090, %v3211
      %3213 = vmatmul.bf16.gmra.mxu0 %v3069
      %v3214 = vpop.f32.mrf.mxu0
      %v3215 = vadd.f32 %v3090, %v3214
      %v3216 = vpop.f32.mrf.mxu0
      %v3217 = vadd.f32 %v3090, %v3216
      %3218 = vmatmul.bf16.gmra.mxu0 %v3070
      %v3219 = vpop.f32.mrf.mxu0
      %v3220 = vadd.f32 %v3090, %v3219
      %v3221 = vpop.f32.mrf.mxu0
      %v3222 = vadd.f32 %v3090, %v3221
      %3223 = vmatmul.bf16.gmra.mxu0 %v3071
      %v3224 = vpop.f32.mrf.mxu0
      %v3225 = vadd.f32 %v3090, %v3224
      %v3226 = vpop.f32.mrf.mxu0
      %v3227 = vadd.f32 %v3090, %v3226
      %3228 = vdwg.mxu0
      %3229 = vst [vmem:[%s445] sm:$0xff] %v3150
      %3230 = vst [vmem:[%s445 + $0x8] sm:$0xff] %v3152
      %3231 = vst [vmem:[%s445 + $0x10] sm:$0xff] %v3155
      %3232 = vst [vmem:[%s445 + $0x18] sm:$0xff] %v3157
      %3233 = vst [vmem:[%s445 + $0x20] sm:$0xff] %v3160
      %3234 = vst [vmem:[%s445 + $0x28] sm:$0xff] %v3162
      %3235 = vst [vmem:[%s445 + $0x30] sm:$0xff] %v3165
      %3236 = vst [vmem:[%s445 + $0x38] sm:$0xff] %v3167
      %3237 = vst [vmem:[%s445 + $0x40] sm:$0xff] %v3170
      %3238 = vst [vmem:[%s445 + $0x48] sm:$0xff] %v3172
      %3239 = vst [vmem:[%s445 + $0x50] sm:$0xff] %v3175
      %3240 = vst [vmem:[%s445 + $0x58] sm:$0xff] %v3177
      %3241 = vst [vmem:[%s445 + $0x60] sm:$0xff] %v3180
      %3242 = vst [vmem:[%s445 + $0x68] sm:$0xff] %v3182
      %3243 = vst [vmem:[%s445 + $0x70] sm:$0xff] %v3185
      %3244 = vst [vmem:[%s445 + $0x78] sm:$0xff] %v3187
      %3245 = vst [vmem:[%s445 + $0x80] sm:$0xff] %v3190
      %3246 = vst [vmem:[%s445 + $0x88] sm:$0xff] %v3192
      %3247 = vst [vmem:[%s445 + $0x90] sm:$0xff] %v3195
      %3248 = vst [vmem:[%s445 + $0x98] sm:$0xff] %v3197
      %3249 = vst [vmem:[%s445 + $0xa0] sm:$0xff] %v3200
      %3250 = vst [vmem:[%s445 + $0xa8] sm:$0xff] %v3202
      %3251 = vst [vmem:[%s445 + $0xb0] sm:$0xff] %v3205
      %3252 = vst [vmem:[%s445 + $0xb8] sm:$0xff] %v3207
      %3253 = vst [vmem:[%s445 + $0xc0] sm:$0xff] %v3210
      %3254 = vst [vmem:[%s445 + $0xc8] sm:$0xff] %v3212
      %3255 = vst [vmem:[%s445 + $0xd0] sm:$0xff] %v3215
      %3256 = vst [vmem:[%s445 + $0xd8] sm:$0xff] %v3217
      %3257 = vst [vmem:[%s445 + $0xe0] sm:$0xff] %v3220
      %3258 = vst [vmem:[%s445 + $0xe8] sm:$0xff] %v3222
      %3259 = vst [vmem:[%s445 + $0xf0] sm:$0xff] %v3225
      %3260 = vst [vmem:[%s445 + $0xf8] sm:$0xff] %v3227
      %s3261 = smul.u32 32, %s24
      %p3262 = scmp.lt.s32.totalorder %s3261, 63
      %s3263 = scalar_select %p3262, %s3261, 63
      %s3264 = smul.addr %s3263, 8
      %s3265 = scalar_lea.vmem %s13, %s3264
      // Predicated region
      $region73: #{net_forward.1} parent=71 // pred_check
        %p3266 = pneg %p320
      $region74: #{net_forward.1} parent=71 // pred_check_branch
        %3268 = sbr.rel (%p3266) target = $region76
      $region75: #{net_forward.1} parent=71 // pred_region
        %s3269 = smul.u32 32, %s24
      $region76: #{net_forward.1} parent=71 // pred_fallthru
        _
    $region72: #{net_forward.1} parent=5 // pred_fallthru
      _
    %p3270 = scmp.le.s32.totalorder 2, %s19
    // Predicated region
    $region77: #{net_forward.1} parent=5 // pred_check
      %p3271 = pneg %p3270
    $region78: #{net_forward.1} parent=5 // pred_check_branch
      %3273 = sbr.rel (%p3271) target = $region80
    $region79: #{net_forward.1} parent=5 // pred_region
      %s3274 = ssub.s32 %s19, 2
      // Predicated region
      $region81: #{net_forward.1} parent=79 // pred_check
        %p3275 = pneg %p326
      $region82: #{net_forward.1} parent=79 // pred_check_branch
        %3277 = sbr.rel (%p3275) target = $region84
      $region83: #{net_forward.1} parent=79 // pred_region
        %s3278 = smul.u32 32, %s25
        %p3279 = scmp.lt.s32.totalorder %s3278, 63
        %s3280 = scalar_select %p3279, %s3278, 63
        %s3281 = smul.addr %s3280, 8
        %s3282 = scalar_lea.vmem %s13, %s3281
      $region84: #{net_forward.1} parent=79 // pred_fallthru
        _
    $region80: #{net_forward.1} parent=5 // pred_fallthru
      _
  $region6: #{net_forward.1} parent=0 // loop_footer
    %s23 = sadd.s32 1, %s19
  $region7: #{net_forward.1} parent=0 // loop_footer_branch
    %18 = sbr.rel target = $region3
  $region8: #{net_forward.1} parent=0 // loop_exit
    _

</llo_original>
